<compile_context>
chip_gen: v7x
topology: tpu7x:2x2x1
jax: 0.10.0
libtpu: 0.0.40
codegen_flags: <defaults>
</compile_context>

<pallas_src>
import functools

import jax
import jax.numpy as jnp
from jax.experimental import pallas as pl
from jax.experimental.pallas import tpu as pltpu


def _fused_encoder_kernel(x_ref, *rest, n_layers, ks, L, LT, n_acc=4):
    """All encoder layers for one (TB, C, L) batch block.

    x_ref      : (TB, C, L)       input activations for this batch block
    rest[2l]   : (k_l, TB*C, LT)  BN-folded, lane-pre-broadcast dw-conv weights
    rest[2l+1] : (TB*C, LT)       BN-folded, lane-pre-broadcast bias/shift
    rest[2n]   : (TB, C, L)       output ref (un-padded)
    rest[2n+1] : (TB*C, LT)       VMEM scratch (lane-aligned padded activations)
    """
    param_refs = rest[:2 * n_layers]
    out_ref = rest[2 * n_layers]
    xb_ref = rest[2 * n_layers + 1]
    TB, C, _ = out_ref.shape
    TBC = TB * C

    # Stage the input into the lane-dense zero-padded (TBC, LT) scratch.
    # Only the tail needs zeroing; the head is overwritten with x.
    xb_ref[:, L:] = jnp.zeros((TBC, LT - L), xb_ref.dtype)
    xb_ref[:, :L] = x_ref[...].reshape(TBC, L)
    xb = xb_ref[...]

    # Valid-column mask, hoisted and reused by every layer.
    col = jax.lax.broadcasted_iota(jnp.int32, (TBC, LT), 1)
    valid = col < L

    for l in range(n_layers):
        k = ks[l]
        left = (k - 1) // 2                      # PyTorch padding='same' split
        w_ref = param_refs[2 * l]                # (k, TBC, LT) lane-dense
        b = param_refs[2 * l + 1][...]           # (TBC, LT)    lane-dense

        # Depthwise 'same' cross-correlation via cyclic lane rolls.  Columns
        # [L, LT) of xb are zero and LT - L >= max(left, right), so every
        # wrapped / overflowed read lands in the zero region, reproducing the
        # zero 'same' padding exactly for output columns [0, L).
        na = min(n_acc, k)
        accs = [None] * na                       # independent accumulators
        for j in range(k):
            sh = (left - j) % LT
            shifted = pltpu.roll(xb, shift=sh, axis=1) if sh else xb
            term = w_ref[j] * shifted            # pure VALU (no lane broadcast)
            s = j % na
            accs[s] = term if accs[s] is None else accs[s] + term
        while len(accs) > 1:                     # pairwise tree combine
            accs = [accs[i] + accs[i + 1] if i + 1 < len(accs) else accs[i]
                    for i in range(0, len(accs), 2)]

        # Fused (conv bias + BN shift) add and pad-region re-zero.  The
        # re-zero is REQUIRED so the next layer's wrapped rolls read zeros.
        xb = jnp.where(valid, accs[0] + b, 0.0)

    out_ref[...] = xb[:, :L].reshape(TB, C, L).astype(out_ref.dtype)


def conv_encoder(x, layer_params, kernel_sizes, *, tb=None):
    """x: (B, C, L) float32 -> (B, C, L) float32 (the chained `src` values)."""
    B, C, L = x.shape
    n_layers = len(kernel_sizes)
    assert C % 8 == 0, "channel dim must be sublane-aligned for the merged view"

    # Roll-wraparound correctness: LT - L >= max(left, right) over all layers
    # (right >= left always), and the pad region is re-zeroed every layer.
    m = max(k - 1 - (k - 1) // 2 for k in kernel_sizes)
    LT = ((L + m + 127) // 128) * 128            # lane-dense padded width
    assert LT - L >= m

    # Batch elements per grid step: as large as divisibility allows while
    # keeping >= 2 grid steps (v7x megacore) and a small vreg footprint.
    if tb is None:
        tb = 1
        for cand in range(min(B, 8), 0, -1):
            if B % cand == 0 and (B // cand >= 2 or B == 1):
                tb = cand
                break
    assert B % tb == 0
    TBC = tb * C

    # Fold eval-mode BatchNorm into the depthwise conv (exact linear fold):
    #   BN(conv_w(x) + b) == conv_{w*sc}(x) + (b*sc + sh)
    # then pre-broadcast to lane-dense layouts so the kernel tap loop is pure
    # VALU work (the review's top XLU-pressure fix).  ~1 MiB total at these k/C.
    flat_inputs = []
    for p, k in zip(layer_params, kernel_sizes):
        w_fold = p["wdw"] * p["sc1"]                       # (C, k)
        b_fold = p["bdw"] * p["sc1"] + p["sh1"]            # (C, 1)
        w_b = jnp.broadcast_to(w_fold.T[:, None, :, None], (k, tb, C, LT))
        b_b = jnp.broadcast_to(b_fold[None, :, :], (tb, C, LT))
        flat_inputs += [w_b.reshape(k, TBC, LT), b_b.reshape(TBC, LT)]

    def rep(shape):                                        # grid-invariant param block
        n = len(shape)
        return pl.BlockSpec(shape, lambda b, n=n: (0,) * n)

    in_specs = [pl.BlockSpec((tb, C, L), lambda b: (b, 0, 0))]
    for arr in flat_inputs:
        in_specs.append(rep(arr.shape))

    kernel = functools.partial(_fused_encoder_kernel, n_layers=n_layers,
                               ks=tuple(kernel_sizes), L=L, LT=LT)

    return pl.pallas_call(
        kernel,
        grid=(B // tb,),
        in_specs=in_specs,
        out_specs=pl.BlockSpec((tb, C, L), lambda b: (b, 0, 0)),
        out_shape=jax.ShapeDtypeStruct((B, C, L), jnp.float32),
        scratch_shapes=[pltpu.VMEM((TBC, LT), jnp.float32)],
        compiler_params=pltpu.CompilerParams(dimension_semantics=("parallel",)),
    )(x, *flat_inputs)


def _reference_conv_encoder(x, layer_params, kernel_sizes):
    """Pure-JAX reference in the original PyTorch op order (conv -> +bias -> BN)."""
    out = x
    L = x.shape[2]
    for p, k in zip(layer_params, kernel_sizes):
        left = (k - 1) // 2
        xp = jnp.pad(out, ((0, 0), (0, 0), (left, k - 1 - left)))
        conv = jnp.zeros_like(out)
        for j in range(k):
            conv = conv + p["wdw"][None, :, j:j + 1] * xp[:, :, j:j + L]
        conv = conv + p["bdw"][None]
        out = conv * p["sc1"][None] + p["sh1"][None]
    return out


def init_layer_params(key, d_model, k, eps=1e-5):
    """Parameters the layer output actually depends on.

    (The reference layer also owns an FFN + second BatchNorm, but since
    forward() returns `src`, those never affect the module output and are
    therefore not materialized here.)
    """
    ks = jax.random.split(key, 8)
    f32 = jnp.float32
    # DW_conv: Conv1d(C, C, k, groups=C)  -> weight (C,1,k) viewed as (C,k)
    wdw = 0.1 * jax.random.normal(ks[0], (d_model, k), f32)
    bdw = 0.1 * jax.random.normal(ks[1], (d_model, 1), f32)
    # dw_norm: BatchNorm1d(d_model) eval-mode params / running stats
    g1 = jax.random.uniform(ks[2], (d_model, 1), f32, 0.5, 1.5)
    be1 = 0.1 * jax.random.normal(ks[3], (d_model, 1), f32)
    m1 = 0.1 * jax.random.normal(ks[4], (d_model, 1), f32)
    v1 = jax.random.uniform(ks[5], (d_model, 1), f32, 0.5, 1.5)
    sc1 = g1 / jnp.sqrt(v1 + eps)
    sh1 = be1 - m1 * sc1
    return dict(wdw=wdw, bdw=bdw, sc1=sc1, sh1=sh1)


if __name__ == "__main__":
    key = jax.random.PRNGKey(0)
    B, d_model, d_ff, L = 2, 32, 64, 64          # d_ff only feeds the dead FFN branch
    n_layers = 3
    kernel_sizes = [19, 19, 29, 29, 37, 37][:n_layers]   # _ConvEncoder default

    k_in, *k_layers = jax.random.split(key, n_layers + 1)
    x = jax.random.normal(k_in, (B, d_model, L), jnp.float32)     # (B, C, L)
    params = [init_layer_params(kl, d_model, ks)
              for kl, ks in zip(k_layers, kernel_sizes)]

    run = jax.jit(lambda xx: conv_encoder(xx, params, kernel_sizes))
    out = run(x)
    jax.block_until_ready(out)

    assert out.shape == (B, d_model, L) and out.dtype == jnp.float32
    ref = _reference_conv_encoder(x, params, kernel_sizes)
    assert bool(jnp.allclose(out, ref, rtol=1e-4, atol=1e-4)), "mismatch vs reference"
    print("KERNEL_OK")
</pallas_src>

<mosaic_0001>
module attributes {stable_mosaic.version = 11 : i64} {
  func.func @_fused_encoder_kernel(%arg0: i32, %arg1: memref<1x32x64xf32, #tpu.memory_space<vmem>>, %arg2: memref<19x32x128xf32, #tpu.memory_space<vmem>>, %arg3: memref<32x128xf32, #tpu.memory_space<vmem>>, %arg4: memref<19x32x128xf32, #tpu.memory_space<vmem>>, %arg5: memref<32x128xf32, #tpu.memory_space<vmem>>, %arg6: memref<29x32x128xf32, #tpu.memory_space<vmem>>, %arg7: memref<32x128xf32, #tpu.memory_space<vmem>>, %arg8: memref<1x32x64xf32, #tpu.memory_space<vmem>>, %arg9: memref<32x128xf32, #tpu.memory_space<vmem>>) attributes {dimension_semantics = [#tpu.dimension_semantics<parallel>], iteration_bounds = array<i64: 2>, scalar_prefetch = 0 : i64, scratch_operands = 1 : i64, tpu.core_type = #tpu.core_type<tc>, window_params = [{transform_indices = @transform_0, window_bounds = array<i64: 1, 32, 64>}, {pipeline_mode = #tpu.pipeline_mode<synchronous>, transform_indices = @transform_1, window_bounds = array<i64: 19, 32, 128>}, {pipeline_mode = #tpu.pipeline_mode<synchronous>, transform_indices = @transform_2, window_bounds = array<i64: 32, 128>}, {pipeline_mode = #tpu.pipeline_mode<synchronous>, transform_indices = @transform_3, window_bounds = array<i64: 19, 32, 128>}, {pipeline_mode = #tpu.pipeline_mode<synchronous>, transform_indices = @transform_4, window_bounds = array<i64: 32, 128>}, {pipeline_mode = #tpu.pipeline_mode<synchronous>, transform_indices = @transform_5, window_bounds = array<i64: 29, 32, 128>}, {pipeline_mode = #tpu.pipeline_mode<synchronous>, transform_indices = @transform_6, window_bounds = array<i64: 32, 128>}, {transform_indices = @transform_7, window_bounds = array<i64: 1, 32, 64>}]} {
    %cst = arith.constant 0.000000e+00 : f32
    %0 = vector.broadcast %cst : f32 to vector<32x64xf32>
    %c0 = arith.constant 0 : index
    %c64 = arith.constant 64 : index
    %1 = vector.load %arg9[%c0, %c64] : memref<32x128xf32, #tpu.memory_space<vmem>>, vector<32x64xf32>
    tpu.vector_store %arg9[%c0, %c64], %0 {strides = array<i32>} : memref<32x128xf32, #tpu.memory_space<vmem>>, vector<32x64xf32>,
    %c0_0 = arith.constant 0 : index
    %c0_1 = arith.constant 0 : index
    %c0_2 = arith.constant 0 : index
    %2 = vector.load %arg1[%c0_0, %c0_1, %c0_2] : memref<1x32x64xf32, #tpu.memory_space<vmem>>, vector<1x32x64xf32>
    %3 = vector.shape_cast %2 : vector<1x32x64xf32> to vector<32x64xf32>
    %c0_3 = arith.constant 0 : index
    %c0_4 = arith.constant 0 : index
    %4 = vector.load %arg9[%c0_3, %c0_4] : memref<32x128xf32, #tpu.memory_space<vmem>>, vector<32x64xf32>
    tpu.vector_store %arg9[%c0_3, %c0_4], %3 {strides = array<i32>} : memref<32x128xf32, #tpu.memory_space<vmem>>, vector<32x64xf32>,
    %c0_5 = arith.constant 0 : index
    %c0_6 = arith.constant 0 : index
    %5 = vector.load %arg9[%c0_5, %c0_6] : memref<32x128xf32, #tpu.memory_space<vmem>>, vector<32x128xf32>
    %6 = tpu.iota {dimensions = array<i32: 1>} : vector<32x128xi32>
    %c64_i32 = arith.constant 64 : i32
    %7 = vector.broadcast %c64_i32 : i32 to vector<32x128xi32>
    %8 = arith.cmpi slt, %6, %7 : vector<32x128xi32>
    %c0_7 = arith.constant 0 : index
    %c0_8 = arith.constant 0 : index
    %9 = vector.load %arg3[%c0_7, %c0_8] : memref<32x128xf32, #tpu.memory_space<vmem>>, vector<32x128xf32>
    %c9_i32 = arith.constant 9 : i32
    %10 = tpu.dynamic_rotate %5 by %c9_i32 dim 1 : vector<32x128xf32>, i32 -> vector<32x128xf32>
    %c0_9 = arith.constant 0 : index
    %c0_10 = arith.constant 0 : index
    %c0_11 = arith.constant 0 : index
    %11 = vector.load %arg2[%c0_9, %c0_10, %c0_11] : memref<19x32x128xf32, #tpu.memory_space<vmem>>, vector<1x32x128xf32>
    %12 = vector.shape_cast %11 : vector<1x32x128xf32> to vector<32x128xf32>
    %13 = arith.mulf %12, %10 : vector<32x128xf32>
    %c8_i32 = arith.constant 8 : i32
    %14 = tpu.dynamic_rotate %5 by %c8_i32 dim 1 : vector<32x128xf32>, i32 -> vector<32x128xf32>
    %c1 = arith.constant 1 : index
    %c0_12 = arith.constant 0 : index
    %c0_13 = arith.constant 0 : index
    %15 = vector.load %arg2[%c1, %c0_12, %c0_13] : memref<19x32x128xf32, #tpu.memory_space<vmem>>, vector<1x32x128xf32>
    %16 = vector.shape_cast %15 : vector<1x32x128xf32> to vector<32x128xf32>
    %17 = arith.mulf %16, %14 : vector<32x128xf32>
    %c7_i32 = arith.constant 7 : i32
    %18 = tpu.dynamic_rotate %5 by %c7_i32 dim 1 : vector<32x128xf32>, i32 -> vector<32x128xf32>
    %c2 = arith.constant 2 : index
    %c0_14 = arith.constant 0 : index
    %c0_15 = arith.constant 0 : index
    %19 = vector.load %arg2[%c2, %c0_14, %c0_15] : memref<19x32x128xf32, #tpu.memory_space<vmem>>, vector<1x32x128xf32>
    %20 = vector.shape_cast %19 : vector<1x32x128xf32> to vector<32x128xf32>
    %21 = arith.mulf %20, %18 : vector<32x128xf32>
    %c6_i32 = arith.constant 6 : i32
    %22 = tpu.dynamic_rotate %5 by %c6_i32 dim 1 : vector<32x128xf32>, i32 -> vector<32x128xf32>
    %c3 = arith.constant 3 : index
    %c0_16 = arith.constant 0 : index
    %c0_17 = arith.constant 0 : index
    %23 = vector.load %arg2[%c3, %c0_16, %c0_17] : memref<19x32x128xf32, #tpu.memory_space<vmem>>, vector<1x32x128xf32>
    %24 = vector.shape_cast %23 : vector<1x32x128xf32> to vector<32x128xf32>
    %25 = arith.mulf %24, %22 : vector<32x128xf32>
    %c5_i32 = arith.constant 5 : i32
    %26 = tpu.dynamic_rotate %5 by %c5_i32 dim 1 : vector<32x128xf32>, i32 -> vector<32x128xf32>
    %c4 = arith.constant 4 : index
    %c0_18 = arith.constant 0 : index
    %c0_19 = arith.constant 0 : index
    %27 = vector.load %arg2[%c4, %c0_18, %c0_19] : memref<19x32x128xf32, #tpu.memory_space<vmem>>, vector<1x32x128xf32>
    %28 = vector.shape_cast %27 : vector<1x32x128xf32> to vector<32x128xf32>
    %29 = arith.mulf %28, %26 : vector<32x128xf32>
    %30 = arith.addf %13, %29 : vector<32x128xf32>
    %c4_i32 = arith.constant 4 : i32
    %31 = tpu.dynamic_rotate %5 by %c4_i32 dim 1 : vector<32x128xf32>, i32 -> vector<32x128xf32>
    %c5 = arith.constant 5 : index
    %c0_20 = arith.constant 0 : index
    %c0_21 = arith.constant 0 : index
    %32 = vector.load %arg2[%c5, %c0_20, %c0_21] : memref<19x32x128xf32, #tpu.memory_space<vmem>>, vector<1x32x128xf32>
    %33 = vector.shape_cast %32 : vector<1x32x128xf32> to vector<32x128xf32>
    %34 = arith.mulf %33, %31 : vector<32x128xf32>
    %35 = arith.addf %17, %34 : vector<32x128xf32>
    %c3_i32 = arith.constant 3 : i32
    %36 = tpu.dynamic_rotate %5 by %c3_i32 dim 1 : vector<32x128xf32>, i32 -> vector<32x128xf32>
    %c6 = arith.constant 6 : index
    %c0_22 = arith.constant 0 : index
    %c0_23 = arith.constant 0 : index
    %37 = vector.load %arg2[%c6, %c0_22, %c0_23] : memref<19x32x128xf32, #tpu.memory_space<vmem>>, vector<1x32x128xf32>
    %38 = vector.shape_cast %37 : vector<1x32x128xf32> to vector<32x128xf32>
    %39 = arith.mulf %38, %36 : vector<32x128xf32>
    %40 = arith.addf %21, %39 : vector<32x128xf32>
    %c2_i32 = arith.constant 2 : i32
    %41 = tpu.dynamic_rotate %5 by %c2_i32 dim 1 : vector<32x128xf32>, i32 -> vector<32x128xf32>
    %c7 = arith.constant 7 : index
    %c0_24 = arith.constant 0 : index
    %c0_25 = arith.constant 0 : index
    %42 = vector.load %arg2[%c7, %c0_24, %c0_25] : memref<19x32x128xf32, #tpu.memory_space<vmem>>, vector<1x32x128xf32>
    %43 = vector.shape_cast %42 : vector<1x32x128xf32> to vector<32x128xf32>
    %44 = arith.mulf %43, %41 : vector<32x128xf32>
    %45 = arith.addf %25, %44 : vector<32x128xf32>
    %c1_i32 = arith.constant 1 : i32
    %46 = tpu.dynamic_rotate %5 by %c1_i32 dim 1 : vector<32x128xf32>, i32 -> vector<32x128xf32>
    %c8 = arith.constant 8 : index
    %c0_26 = arith.constant 0 : index
    %c0_27 = arith.constant 0 : index
    %47 = vector.load %arg2[%c8, %c0_26, %c0_27] : memref<19x32x128xf32, #tpu.memory_space<vmem>>, vector<1x32x128xf32>
    %48 = vector.shape_cast %47 : vector<1x32x128xf32> to vector<32x128xf32>
    %49 = arith.mulf %48, %46 : vector<32x128xf32>
    %50 = arith.addf %30, %49 : vector<32x128xf32>
    %c9 = arith.constant 9 : index
    %c0_28 = arith.constant 0 : index
    %c0_29 = arith.constant 0 : index
    %51 = vector.load %arg2[%c9, %c0_28, %c0_29] : memref<19x32x128xf32, #tpu.memory_space<vmem>>, vector<1x32x128xf32>
    %52 = vector.shape_cast %51 : vector<1x32x128xf32> to vector<32x128xf32>
    %53 = arith.mulf %52, %5 : vector<32x128xf32>
    %54 = arith.addf %35, %53 : vector<32x128xf32>
    %c127_i32 = arith.constant 127 : i32
    %55 = tpu.dynamic_rotate %5 by %c127_i32 dim 1 : vector<32x128xf32>, i32 -> vector<32x128xf32>
    %c10 = arith.constant 10 : index
    %c0_30 = arith.constant 0 : index
    %c0_31 = arith.constant 0 : index
    %56 = vector.load %arg2[%c10, %c0_30, %c0_31] : memref<19x32x128xf32, #tpu.memory_space<vmem>>, vector<1x32x128xf32>
    %57 = vector.shape_cast %56 : vector<1x32x128xf32> to vector<32x128xf32>
    %58 = arith.mulf %57, %55 : vector<32x128xf32>
    %59 = arith.addf %40, %58 : vector<32x128xf32>
    %c126_i32 = arith.constant 126 : i32
    %60 = tpu.dynamic_rotate %5 by %c126_i32 dim 1 : vector<32x128xf32>, i32 -> vector<32x128xf32>
    %c11 = arith.constant 11 : index
    %c0_32 = arith.constant 0 : index
    %c0_33 = arith.constant 0 : index
    %61 = vector.load %arg2[%c11, %c0_32, %c0_33] : memref<19x32x128xf32, #tpu.memory_space<vmem>>, vector<1x32x128xf32>
    %62 = vector.shape_cast %61 : vector<1x32x128xf32> to vector<32x128xf32>
    %63 = arith.mulf %62, %60 : vector<32x128xf32>
    %64 = arith.addf %45, %63 : vector<32x128xf32>
    %c125_i32 = arith.constant 125 : i32
    %65 = tpu.dynamic_rotate %5 by %c125_i32 dim 1 : vector<32x128xf32>, i32 -> vector<32x128xf32>
    %c12 = arith.constant 12 : index
    %c0_34 = arith.constant 0 : index
    %c0_35 = arith.constant 0 : index
    %66 = vector.load %arg2[%c12, %c0_34, %c0_35] : memref<19x32x128xf32, #tpu.memory_space<vmem>>, vector<1x32x128xf32>
    %67 = vector.shape_cast %66 : vector<1x32x128xf32> to vector<32x128xf32>
    %68 = arith.mulf %67, %65 : vector<32x128xf32>
    %69 = arith.addf %50, %68 : vector<32x128xf32>
    %c124_i32 = arith.constant 124 : i32
    %70 = tpu.dynamic_rotate %5 by %c124_i32 dim 1 : vector<32x128xf32>, i32 -> vector<32x128xf32>
    %c13 = arith.constant 13 : index
    %c0_36 = arith.constant 0 : index
    %c0_37 = arith.constant 0 : index
    %71 = vector.load %arg2[%c13, %c0_36, %c0_37] : memref<19x32x128xf32, #tpu.memory_space<vmem>>, vector<1x32x128xf32>
    %72 = vector.shape_cast %71 : vector<1x32x128xf32> to vector<32x128xf32>
    %73 = arith.mulf %72, %70 : vector<32x128xf32>
    %74 = arith.addf %54, %73 : vector<32x128xf32>
    %c123_i32 = arith.constant 123 : i32
    %75 = tpu.dynamic_rotate %5 by %c123_i32 dim 1 : vector<32x128xf32>, i32 -> vector<32x128xf32>
    %c14 = arith.constant 14 : index
    %c0_38 = arith.constant 0 : index
    %c0_39 = arith.constant 0 : index
    %76 = vector.load %arg2[%c14, %c0_38, %c0_39] : memref<19x32x128xf32, #tpu.memory_space<vmem>>, vector<1x32x128xf32>
    %77 = vector.shape_cast %76 : vector<1x32x128xf32> to vector<32x128xf32>
    %78 = arith.mulf %77, %75 : vector<32x128xf32>
    %79 = arith.addf %59, %78 : vector<32x128xf32>
    %c122_i32 = arith.constant 122 : i32
    %80 = tpu.dynamic_rotate %5 by %c122_i32 dim 1 : vector<32x128xf32>, i32 -> vector<32x128xf32>
    %c15 = arith.constant 15 : index
    %c0_40 = arith.constant 0 : index
    %c0_41 = arith.constant 0 : index
    %81 = vector.load %arg2[%c15, %c0_40, %c0_41] : memref<19x32x128xf32, #tpu.memory_space<vmem>>, vector<1x32x128xf32>
    %82 = vector.shape_cast %81 : vector<1x32x128xf32> to vector<32x128xf32>
    %83 = arith.mulf %82, %80 : vector<32x128xf32>
    %84 = arith.addf %64, %83 : vector<32x128xf32>
    %c121_i32 = arith.constant 121 : i32
    %85 = tpu.dynamic_rotate %5 by %c121_i32 dim 1 : vector<32x128xf32>, i32 -> vector<32x128xf32>
    %c16 = arith.constant 16 : index
    %c0_42 = arith.constant 0 : index
    %c0_43 = arith.constant 0 : index
    %86 = vector.load %arg2[%c16, %c0_42, %c0_43] : memref<19x32x128xf32, #tpu.memory_space<vmem>>, vector<1x32x128xf32>
    %87 = vector.shape_cast %86 : vector<1x32x128xf32> to vector<32x128xf32>
    %88 = arith.mulf %87, %85 : vector<32x128xf32>
    %89 = arith.addf %69, %88 : vector<32x128xf32>
    %c120_i32 = arith.constant 120 : i32
    %90 = tpu.dynamic_rotate %5 by %c120_i32 dim 1 : vector<32x128xf32>, i32 -> vector<32x128xf32>
    %c17 = arith.constant 17 : index
    %c0_44 = arith.constant 0 : index
    %c0_45 = arith.constant 0 : index
    %91 = vector.load %arg2[%c17, %c0_44, %c0_45] : memref<19x32x128xf32, #tpu.memory_space<vmem>>, vector<1x32x128xf32>
    %92 = vector.shape_cast %91 : vector<1x32x128xf32> to vector<32x128xf32>
    %93 = arith.mulf %92, %90 : vector<32x128xf32>
    %94 = arith.addf %74, %93 : vector<32x128xf32>
    %c119_i32 = arith.constant 119 : i32
    %95 = tpu.dynamic_rotate %5 by %c119_i32 dim 1 : vector<32x128xf32>, i32 -> vector<32x128xf32>
    %c18 = arith.constant 18 : index
    %c0_46 = arith.constant 0 : index
    %c0_47 = arith.constant 0 : index
    %96 = vector.load %arg2[%c18, %c0_46, %c0_47] : memref<19x32x128xf32, #tpu.memory_space<vmem>>, vector<1x32x128xf32>
    %97 = vector.shape_cast %96 : vector<1x32x128xf32> to vector<32x128xf32>
    %98 = arith.mulf %97, %95 : vector<32x128xf32>
    %99 = arith.addf %79, %98 : vector<32x128xf32>
    %100 = arith.addf %89, %94 : vector<32x128xf32>
    %101 = arith.addf %99, %84 : vector<32x128xf32>
    %102 = arith.addf %100, %101 : vector<32x128xf32>
    %103 = arith.addf %102, %9 : vector<32x128xf32>
    %cst_48 = arith.constant 0.000000e+00 : f32
    %104 = vector.broadcast %cst_48 : f32 to vector<32x128xf32>
    %105 = arith.select %8, %103, %104 : vector<32x128xi1>, vector<32x128xf32>
    %c0_49 = arith.constant 0 : index
    %c0_50 = arith.constant 0 : index
    %106 = vector.load %arg5[%c0_49, %c0_50] : memref<32x128xf32, #tpu.memory_space<vmem>>, vector<32x128xf32>
    %c9_i32_51 = arith.constant 9 : i32
    %107 = tpu.dynamic_rotate %105 by %c9_i32_51 dim 1 : vector<32x128xf32>, i32 -> vector<32x128xf32>
    %c0_52 = arith.constant 0 : index
    %c0_53 = arith.constant 0 : index
    %c0_54 = arith.constant 0 : index
    %108 = vector.load %arg4[%c0_52, %c0_53, %c0_54] : memref<19x32x128xf32, #tpu.memory_space<vmem>>, vector<1x32x128xf32>
    %109 = vector.shape_cast %108 : vector<1x32x128xf32> to vector<32x128xf32>
    %110 = arith.mulf %109, %107 : vector<32x128xf32>
    %c8_i32_55 = arith.constant 8 : i32
    %111 = tpu.dynamic_rotate %105 by %c8_i32_55 dim 1 : vector<32x128xf32>, i32 -> vector<32x128xf32>
    %c1_56 = arith.constant 1 : index
    %c0_57 = arith.constant 0 : index
    %c0_58 = arith.constant 0 : index
    %112 = vector.load %arg4[%c1_56, %c0_57, %c0_58] : memref<19x32x128xf32, #tpu.memory_space<vmem>>, vector<1x32x128xf32>
    %113 = vector.shape_cast %112 : vector<1x32x128xf32> to vector<32x128xf32>
    %114 = arith.mulf %113, %111 : vector<32x128xf32>
    %c7_i32_59 = arith.constant 7 : i32
    %115 = tpu.dynamic_rotate %105 by %c7_i32_59 dim 1 : vector<32x128xf32>, i32 -> vector<32x128xf32>
    %c2_60 = arith.constant 2 : index
    %c0_61 = arith.constant 0 : index
    %c0_62 = arith.constant 0 : index
    %116 = vector.load %arg4[%c2_60, %c0_61, %c0_62] : memref<19x32x128xf32, #tpu.memory_space<vmem>>, vector<1x32x128xf32>
    %117 = vector.shape_cast %116 : vector<1x32x128xf32> to vector<32x128xf32>
    %118 = arith.mulf %117, %115 : vector<32x128xf32>
    %c6_i32_63 = arith.constant 6 : i32
    %119 = tpu.dynamic_rotate %105 by %c6_i32_63 dim 1 : vector<32x128xf32>, i32 -> vector<32x128xf32>
    %c3_64 = arith.constant 3 : index
    %c0_65 = arith.constant 0 : index
    %c0_66 = arith.constant 0 : index
    %120 = vector.load %arg4[%c3_64, %c0_65, %c0_66] : memref<19x32x128xf32, #tpu.memory_space<vmem>>, vector<1x32x128xf32>
    %121 = vector.shape_cast %120 : vector<1x32x128xf32> to vector<32x128xf32>
    %122 = arith.mulf %121, %119 : vector<32x128xf32>
    %c5_i32_67 = arith.constant 5 : i32
    %123 = tpu.dynamic_rotate %105 by %c5_i32_67 dim 1 : vector<32x128xf32>, i32 -> vector<32x128xf32>
    %c4_68 = arith.constant 4 : index
    %c0_69 = arith.constant 0 : index
    %c0_70 = arith.constant 0 : index
    %124 = vector.load %arg4[%c4_68, %c0_69, %c0_70] : memref<19x32x128xf32, #tpu.memory_space<vmem>>, vector<1x32x128xf32>
    %125 = vector.shape_cast %124 : vector<1x32x128xf32> to vector<32x128xf32>
    %126 = arith.mulf %125, %123 : vector<32x128xf32>
    %127 = arith.addf %110, %126 : vector<32x128xf32>
    %c4_i32_71 = arith.constant 4 : i32
    %128 = tpu.dynamic_rotate %105 by %c4_i32_71 dim 1 : vector<32x128xf32>, i32 -> vector<32x128xf32>
    %c5_72 = arith.constant 5 : index
    %c0_73 = arith.constant 0 : index
    %c0_74 = arith.constant 0 : index
    %129 = vector.load %arg4[%c5_72, %c0_73, %c0_74] : memref<19x32x128xf32, #tpu.memory_space<vmem>>, vector<1x32x128xf32>
    %130 = vector.shape_cast %129 : vector<1x32x128xf32> to vector<32x128xf32>
    %131 = arith.mulf %130, %128 : vector<32x128xf32>
    %132 = arith.addf %114, %131 : vector<32x128xf32>
    %c3_i32_75 = arith.constant 3 : i32
    %133 = tpu.dynamic_rotate %105 by %c3_i32_75 dim 1 : vector<32x128xf32>, i32 -> vector<32x128xf32>
    %c6_76 = arith.constant 6 : index
    %c0_77 = arith.constant 0 : index
    %c0_78 = arith.constant 0 : index
    %134 = vector.load %arg4[%c6_76, %c0_77, %c0_78] : memref<19x32x128xf32, #tpu.memory_space<vmem>>, vector<1x32x128xf32>
    %135 = vector.shape_cast %134 : vector<1x32x128xf32> to vector<32x128xf32>
    %136 = arith.mulf %135, %133 : vector<32x128xf32>
    %137 = arith.addf %118, %136 : vector<32x128xf32>
    %c2_i32_79 = arith.constant 2 : i32
    %138 = tpu.dynamic_rotate %105 by %c2_i32_79 dim 1 : vector<32x128xf32>, i32 -> vector<32x128xf32>
    %c7_80 = arith.constant 7 : index
    %c0_81 = arith.constant 0 : index
    %c0_82 = arith.constant 0 : index
    %139 = vector.load %arg4[%c7_80, %c0_81, %c0_82] : memref<19x32x128xf32, #tpu.memory_space<vmem>>, vector<1x32x128xf32>
    %140 = vector.shape_cast %139 : vector<1x32x128xf32> to vector<32x128xf32>
    %141 = arith.mulf %140, %138 : vector<32x128xf32>
    %142 = arith.addf %122, %141 : vector<32x128xf32>
    %c1_i32_83 = arith.constant 1 : i32
    %143 = tpu.dynamic_rotate %105 by %c1_i32_83 dim 1 : vector<32x128xf32>, i32 -> vector<32x128xf32>
    %c8_84 = arith.constant 8 : index
    %c0_85 = arith.constant 0 : index
    %c0_86 = arith.constant 0 : index
    %144 = vector.load %arg4[%c8_84, %c0_85, %c0_86] : memref<19x32x128xf32, #tpu.memory_space<vmem>>, vector<1x32x128xf32>
    %145 = vector.shape_cast %144 : vector<1x32x128xf32> to vector<32x128xf32>
    %146 = arith.mulf %145, %143 : vector<32x128xf32>
    %147 = arith.addf %127, %146 : vector<32x128xf32>
    %c9_87 = arith.constant 9 : index
    %c0_88 = arith.constant 0 : index
    %c0_89 = arith.constant 0 : index
    %148 = vector.load %arg4[%c9_87, %c0_88, %c0_89] : memref<19x32x128xf32, #tpu.memory_space<vmem>>, vector<1x32x128xf32>
    %149 = vector.shape_cast %148 : vector<1x32x128xf32> to vector<32x128xf32>
    %150 = arith.mulf %149, %105 : vector<32x128xf32>
    %151 = arith.addf %132, %150 : vector<32x128xf32>
    %c127_i32_90 = arith.constant 127 : i32
    %152 = tpu.dynamic_rotate %105 by %c127_i32_90 dim 1 : vector<32x128xf32>, i32 -> vector<32x128xf32>
    %c10_91 = arith.constant 10 : index
    %c0_92 = arith.constant 0 : index
    %c0_93 = arith.constant 0 : index
    %153 = vector.load %arg4[%c10_91, %c0_92, %c0_93] : memref<19x32x128xf32, #tpu.memory_space<vmem>>, vector<1x32x128xf32>
    %154 = vector.shape_cast %153 : vector<1x32x128xf32> to vector<32x128xf32>
    %155 = arith.mulf %154, %152 : vector<32x128xf32>
    %156 = arith.addf %137, %155 : vector<32x128xf32>
    %c126_i32_94 = arith.constant 126 : i32
    %157 = tpu.dynamic_rotate %105 by %c126_i32_94 dim 1 : vector<32x128xf32>, i32 -> vector<32x128xf32>
    %c11_95 = arith.constant 11 : index
    %c0_96 = arith.constant 0 : index
    %c0_97 = arith.constant 0 : index
    %158 = vector.load %arg4[%c11_95, %c0_96, %c0_97] : memref<19x32x128xf32, #tpu.memory_space<vmem>>, vector<1x32x128xf32>
    %159 = vector.shape_cast %158 : vector<1x32x128xf32> to vector<32x128xf32>
    %160 = arith.mulf %159, %157 : vector<32x128xf32>
    %161 = arith.addf %142, %160 : vector<32x128xf32>
    %c125_i32_98 = arith.constant 125 : i32
    %162 = tpu.dynamic_rotate %105 by %c125_i32_98 dim 1 : vector<32x128xf32>, i32 -> vector<32x128xf32>
    %c12_99 = arith.constant 12 : index
    %c0_100 = arith.constant 0 : index
    %c0_101 = arith.constant 0 : index
    %163 = vector.load %arg4[%c12_99, %c0_100, %c0_101] : memref<19x32x128xf32, #tpu.memory_space<vmem>>, vector<1x32x128xf32>
    %164 = vector.shape_cast %163 : vector<1x32x128xf32> to vector<32x128xf32>
    %165 = arith.mulf %164, %162 : vector<32x128xf32>
    %166 = arith.addf %147, %165 : vector<32x128xf32>
    %c124_i32_102 = arith.constant 124 : i32
    %167 = tpu.dynamic_rotate %105 by %c124_i32_102 dim 1 : vector<32x128xf32>, i32 -> vector<32x128xf32>
    %c13_103 = arith.constant 13 : index
    %c0_104 = arith.constant 0 : index
    %c0_105 = arith.constant 0 : index
    %168 = vector.load %arg4[%c13_103, %c0_104, %c0_105] : memref<19x32x128xf32, #tpu.memory_space<vmem>>, vector<1x32x128xf32>
    %169 = vector.shape_cast %168 : vector<1x32x128xf32> to vector<32x128xf32>
    %170 = arith.mulf %169, %167 : vector<32x128xf32>
    %171 = arith.addf %151, %170 : vector<32x128xf32>
    %c123_i32_106 = arith.constant 123 : i32
    %172 = tpu.dynamic_rotate %105 by %c123_i32_106 dim 1 : vector<32x128xf32>, i32 -> vector<32x128xf32>
    %c14_107 = arith.constant 14 : index
    %c0_108 = arith.constant 0 : index
    %c0_109 = arith.constant 0 : index
    %173 = vector.load %arg4[%c14_107, %c0_108, %c0_109] : memref<19x32x128xf32, #tpu.memory_space<vmem>>, vector<1x32x128xf32>
    %174 = vector.shape_cast %173 : vector<1x32x128xf32> to vector<32x128xf32>
    %175 = arith.mulf %174, %172 : vector<32x128xf32>
    %176 = arith.addf %156, %175 : vector<32x128xf32>
    %c122_i32_110 = arith.constant 122 : i32
    %177 = tpu.dynamic_rotate %105 by %c122_i32_110 dim 1 : vector<32x128xf32>, i32 -> vector<32x128xf32>
    %c15_111 = arith.constant 15 : index
    %c0_112 = arith.constant 0 : index
    %c0_113 = arith.constant 0 : index
    %178 = vector.load %arg4[%c15_111, %c0_112, %c0_113] : memref<19x32x128xf32, #tpu.memory_space<vmem>>, vector<1x32x128xf32>
    %179 = vector.shape_cast %178 : vector<1x32x128xf32> to vector<32x128xf32>
    %180 = arith.mulf %179, %177 : vector<32x128xf32>
    %181 = arith.addf %161, %180 : vector<32x128xf32>
    %c121_i32_114 = arith.constant 121 : i32
    %182 = tpu.dynamic_rotate %105 by %c121_i32_114 dim 1 : vector<32x128xf32>, i32 -> vector<32x128xf32>
    %c16_115 = arith.constant 16 : index
    %c0_116 = arith.constant 0 : index
    %c0_117 = arith.constant 0 : index
    %183 = vector.load %arg4[%c16_115, %c0_116, %c0_117] : memref<19x32x128xf32, #tpu.memory_space<vmem>>, vector<1x32x128xf32>
    %184 = vector.shape_cast %183 : vector<1x32x128xf32> to vector<32x128xf32>
    %185 = arith.mulf %184, %182 : vector<32x128xf32>
    %186 = arith.addf %166, %185 : vector<32x128xf32>
    %c120_i32_118 = arith.constant 120 : i32
    %187 = tpu.dynamic_rotate %105 by %c120_i32_118 dim 1 : vector<32x128xf32>, i32 -> vector<32x128xf32>
    %c17_119 = arith.constant 17 : index
    %c0_120 = arith.constant 0 : index
    %c0_121 = arith.constant 0 : index
    %188 = vector.load %arg4[%c17_119, %c0_120, %c0_121] : memref<19x32x128xf32, #tpu.memory_space<vmem>>, vector<1x32x128xf32>
    %189 = vector.shape_cast %188 : vector<1x32x128xf32> to vector<32x128xf32>
    %190 = arith.mulf %189, %187 : vector<32x128xf32>
    %191 = arith.addf %171, %190 : vector<32x128xf32>
    %c119_i32_122 = arith.constant 119 : i32
    %192 = tpu.dynamic_rotate %105 by %c119_i32_122 dim 1 : vector<32x128xf32>, i32 -> vector<32x128xf32>
    %c18_123 = arith.constant 18 : index
    %c0_124 = arith.constant 0 : index
    %c0_125 = arith.constant 0 : index
    %193 = vector.load %arg4[%c18_123, %c0_124, %c0_125] : memref<19x32x128xf32, #tpu.memory_space<vmem>>, vector<1x32x128xf32>
    %194 = vector.shape_cast %193 : vector<1x32x128xf32> to vector<32x128xf32>
    %195 = arith.mulf %194, %192 : vector<32x128xf32>
    %196 = arith.addf %176, %195 : vector<32x128xf32>
    %197 = arith.addf %186, %191 : vector<32x128xf32>
    %198 = arith.addf %196, %181 : vector<32x128xf32>
    %199 = arith.addf %197, %198 : vector<32x128xf32>
    %200 = arith.addf %199, %106 : vector<32x128xf32>
    %cst_126 = arith.constant 0.000000e+00 : f32
    %201 = vector.broadcast %cst_126 : f32 to vector<32x128xf32>
    %202 = arith.select %8, %200, %201 : vector<32x128xi1>, vector<32x128xf32>
    %c0_127 = arith.constant 0 : index
    %c0_128 = arith.constant 0 : index
    %203 = vector.load %arg7[%c0_127, %c0_128] : memref<32x128xf32, #tpu.memory_space<vmem>>, vector<32x128xf32>
    %c14_i32 = arith.constant 14 : i32
    %204 = tpu.dynamic_rotate %202 by %c14_i32 dim 1 : vector<32x128xf32>, i32 -> vector<32x128xf32>
    %c0_129 = arith.constant 0 : index
    %c0_130 = arith.constant 0 : index
    %c0_131 = arith.constant 0 : index
    %205 = vector.load %arg6[%c0_129, %c0_130, %c0_131] : memref<29x32x128xf32, #tpu.memory_space<vmem>>, vector<1x32x128xf32>
    %206 = vector.shape_cast %205 : vector<1x32x128xf32> to vector<32x128xf32>
    %207 = arith.mulf %206, %204 : vector<32x128xf32>
    %c13_i32 = arith.constant 13 : i32
    %208 = tpu.dynamic_rotate %202 by %c13_i32 dim 1 : vector<32x128xf32>, i32 -> vector<32x128xf32>
    %c1_132 = arith.constant 1 : index
    %c0_133 = arith.constant 0 : index
    %c0_134 = arith.constant 0 : index
    %209 = vector.load %arg6[%c1_132, %c0_133, %c0_134] : memref<29x32x128xf32, #tpu.memory_space<vmem>>, vector<1x32x128xf32>
    %210 = vector.shape_cast %209 : vector<1x32x128xf32> to vector<32x128xf32>
    %211 = arith.mulf %210, %208 : vector<32x128xf32>
    %c12_i32 = arith.constant 12 : i32
    %212 = tpu.dynamic_rotate %202 by %c12_i32 dim 1 : vector<32x128xf32>, i32 -> vector<32x128xf32>
    %c2_135 = arith.constant 2 : index
    %c0_136 = arith.constant 0 : index
    %c0_137 = arith.constant 0 : index
    %213 = vector.load %arg6[%c2_135, %c0_136, %c0_137] : memref<29x32x128xf32, #tpu.memory_space<vmem>>, vector<1x32x128xf32>
    %214 = vector.shape_cast %213 : vector<1x32x128xf32> to vector<32x128xf32>
    %215 = arith.mulf %214, %212 : vector<32x128xf32>
    %c11_i32 = arith.constant 11 : i32
    %216 = tpu.dynamic_rotate %202 by %c11_i32 dim 1 : vector<32x128xf32>, i32 -> vector<32x128xf32>
    %c3_138 = arith.constant 3 : index
    %c0_139 = arith.constant 0 : index
    %c0_140 = arith.constant 0 : index
    %217 = vector.load %arg6[%c3_138, %c0_139, %c0_140] : memref<29x32x128xf32, #tpu.memory_space<vmem>>, vector<1x32x128xf32>
    %218 = vector.shape_cast %217 : vector<1x32x128xf32> to vector<32x128xf32>
    %219 = arith.mulf %218, %216 : vector<32x128xf32>
    %c10_i32 = arith.constant 10 : i32
    %220 = tpu.dynamic_rotate %202 by %c10_i32 dim 1 : vector<32x128xf32>, i32 -> vector<32x128xf32>
    %c4_141 = arith.constant 4 : index
    %c0_142 = arith.constant 0 : index
    %c0_143 = arith.constant 0 : index
    %221 = vector.load %arg6[%c4_141, %c0_142, %c0_143] : memref<29x32x128xf32, #tpu.memory_space<vmem>>, vector<1x32x128xf32>
    %222 = vector.shape_cast %221 : vector<1x32x128xf32> to vector<32x128xf32>
    %223 = arith.mulf %222, %220 : vector<32x128xf32>
    %224 = arith.addf %207, %223 : vector<32x128xf32>
    %c9_i32_144 = arith.constant 9 : i32
    %225 = tpu.dynamic_rotate %202 by %c9_i32_144 dim 1 : vector<32x128xf32>, i32 -> vector<32x128xf32>
    %c5_145 = arith.constant 5 : index
    %c0_146 = arith.constant 0 : index
    %c0_147 = arith.constant 0 : index
    %226 = vector.load %arg6[%c5_145, %c0_146, %c0_147] : memref<29x32x128xf32, #tpu.memory_space<vmem>>, vector<1x32x128xf32>
    %227 = vector.shape_cast %226 : vector<1x32x128xf32> to vector<32x128xf32>
    %228 = arith.mulf %227, %225 : vector<32x128xf32>
    %229 = arith.addf %211, %228 : vector<32x128xf32>
    %c8_i32_148 = arith.constant 8 : i32
    %230 = tpu.dynamic_rotate %202 by %c8_i32_148 dim 1 : vector<32x128xf32>, i32 -> vector<32x128xf32>
    %c6_149 = arith.constant 6 : index
    %c0_150 = arith.constant 0 : index
    %c0_151 = arith.constant 0 : index
    %231 = vector.load %arg6[%c6_149, %c0_150, %c0_151] : memref<29x32x128xf32, #tpu.memory_space<vmem>>, vector<1x32x128xf32>
    %232 = vector.shape_cast %231 : vector<1x32x128xf32> to vector<32x128xf32>
    %233 = arith.mulf %232, %230 : vector<32x128xf32>
    %234 = arith.addf %215, %233 : vector<32x128xf32>
    %c7_i32_152 = arith.constant 7 : i32
    %235 = tpu.dynamic_rotate %202 by %c7_i32_152 dim 1 : vector<32x128xf32>, i32 -> vector<32x128xf32>
    %c7_153 = arith.constant 7 : index
    %c0_154 = arith.constant 0 : index
    %c0_155 = arith.constant 0 : index
    %236 = vector.load %arg6[%c7_153, %c0_154, %c0_155] : memref<29x32x128xf32, #tpu.memory_space<vmem>>, vector<1x32x128xf32>
    %237 = vector.shape_cast %236 : vector<1x32x128xf32> to vector<32x128xf32>
    %238 = arith.mulf %237, %235 : vector<32x128xf32>
    %239 = arith.addf %219, %238 : vector<32x128xf32>
    %c6_i32_156 = arith.constant 6 : i32
    %240 = tpu.dynamic_rotate %202 by %c6_i32_156 dim 1 : vector<32x128xf32>, i32 -> vector<32x128xf32>
    %c8_157 = arith.constant 8 : index
    %c0_158 = arith.constant 0 : index
    %c0_159 = arith.constant 0 : index
    %241 = vector.load %arg6[%c8_157, %c0_158, %c0_159] : memref<29x32x128xf32, #tpu.memory_space<vmem>>, vector<1x32x128xf32>
    %242 = vector.shape_cast %241 : vector<1x32x128xf32> to vector<32x128xf32>
    %243 = arith.mulf %242, %240 : vector<32x128xf32>
    %244 = arith.addf %224, %243 : vector<32x128xf32>
    %c5_i32_160 = arith.constant 5 : i32
    %245 = tpu.dynamic_rotate %202 by %c5_i32_160 dim 1 : vector<32x128xf32>, i32 -> vector<32x128xf32>
    %c9_161 = arith.constant 9 : index
    %c0_162 = arith.constant 0 : index
    %c0_163 = arith.constant 0 : index
    %246 = vector.load %arg6[%c9_161, %c0_162, %c0_163] : memref<29x32x128xf32, #tpu.memory_space<vmem>>, vector<1x32x128xf32>
    %247 = vector.shape_cast %246 : vector<1x32x128xf32> to vector<32x128xf32>
    %248 = arith.mulf %247, %245 : vector<32x128xf32>
    %249 = arith.addf %229, %248 : vector<32x128xf32>
    %c4_i32_164 = arith.constant 4 : i32
    %250 = tpu.dynamic_rotate %202 by %c4_i32_164 dim 1 : vector<32x128xf32>, i32 -> vector<32x128xf32>
    %c10_165 = arith.constant 10 : index
    %c0_166 = arith.constant 0 : index
    %c0_167 = arith.constant 0 : index
    %251 = vector.load %arg6[%c10_165, %c0_166, %c0_167] : memref<29x32x128xf32, #tpu.memory_space<vmem>>, vector<1x32x128xf32>
    %252 = vector.shape_cast %251 : vector<1x32x128xf32> to vector<32x128xf32>
    %253 = arith.mulf %252, %250 : vector<32x128xf32>
    %254 = arith.addf %234, %253 : vector<32x128xf32>
    %c3_i32_168 = arith.constant 3 : i32
    %255 = tpu.dynamic_rotate %202 by %c3_i32_168 dim 1 : vector<32x128xf32>, i32 -> vector<32x128xf32>
    %c11_169 = arith.constant 11 : index
    %c0_170 = arith.constant 0 : index
    %c0_171 = arith.constant 0 : index
    %256 = vector.load %arg6[%c11_169, %c0_170, %c0_171] : memref<29x32x128xf32, #tpu.memory_space<vmem>>, vector<1x32x128xf32>
    %257 = vector.shape_cast %256 : vector<1x32x128xf32> to vector<32x128xf32>
    %258 = arith.mulf %257, %255 : vector<32x128xf32>
    %259 = arith.addf %239, %258 : vector<32x128xf32>
    %c2_i32_172 = arith.constant 2 : i32
    %260 = tpu.dynamic_rotate %202 by %c2_i32_172 dim 1 : vector<32x128xf32>, i32 -> vector<32x128xf32>
    %c12_173 = arith.constant 12 : index
    %c0_174 = arith.constant 0 : index
    %c0_175 = arith.constant 0 : index
    %261 = vector.load %arg6[%c12_173, %c0_174, %c0_175] : memref<29x32x128xf32, #tpu.memory_space<vmem>>, vector<1x32x128xf32>
    %262 = vector.shape_cast %261 : vector<1x32x128xf32> to vector<32x128xf32>
    %263 = arith.mulf %262, %260 : vector<32x128xf32>
    %264 = arith.addf %244, %263 : vector<32x128xf32>
    %c1_i32_176 = arith.constant 1 : i32
    %265 = tpu.dynamic_rotate %202 by %c1_i32_176 dim 1 : vector<32x128xf32>, i32 -> vector<32x128xf32>
    %c13_177 = arith.constant 13 : index
    %c0_178 = arith.constant 0 : index
    %c0_179 = arith.constant 0 : index
    %266 = vector.load %arg6[%c13_177, %c0_178, %c0_179] : memref<29x32x128xf32, #tpu.memory_space<vmem>>, vector<1x32x128xf32>
    %267 = vector.shape_cast %266 : vector<1x32x128xf32> to vector<32x128xf32>
    %268 = arith.mulf %267, %265 : vector<32x128xf32>
    %269 = arith.addf %249, %268 : vector<32x128xf32>
    %c14_180 = arith.constant 14 : index
    %c0_181 = arith.constant 0 : index
    %c0_182 = arith.constant 0 : index
    %270 = vector.load %arg6[%c14_180, %c0_181, %c0_182] : memref<29x32x128xf32, #tpu.memory_space<vmem>>, vector<1x32x128xf32>
    %271 = vector.shape_cast %270 : vector<1x32x128xf32> to vector<32x128xf32>
    %272 = arith.mulf %271, %202 : vector<32x128xf32>
    %273 = arith.addf %254, %272 : vector<32x128xf32>
    %c127_i32_183 = arith.constant 127 : i32
    %274 = tpu.dynamic_rotate %202 by %c127_i32_183 dim 1 : vector<32x128xf32>, i32 -> vector<32x128xf32>
    %c15_184 = arith.constant 15 : index
    %c0_185 = arith.constant 0 : index
    %c0_186 = arith.constant 0 : index
    %275 = vector.load %arg6[%c15_184, %c0_185, %c0_186] : memref<29x32x128xf32, #tpu.memory_space<vmem>>, vector<1x32x128xf32>
    %276 = vector.shape_cast %275 : vector<1x32x128xf32> to vector<32x128xf32>
    %277 = arith.mulf %276, %274 : vector<32x128xf32>
    %278 = arith.addf %259, %277 : vector<32x128xf32>
    %c126_i32_187 = arith.constant 126 : i32
    %279 = tpu.dynamic_rotate %202 by %c126_i32_187 dim 1 : vector<32x128xf32>, i32 -> vector<32x128xf32>
    %c16_188 = arith.constant 16 : index
    %c0_189 = arith.constant 0 : index
    %c0_190 = arith.constant 0 : index
    %280 = vector.load %arg6[%c16_188, %c0_189, %c0_190] : memref<29x32x128xf32, #tpu.memory_space<vmem>>, vector<1x32x128xf32>
    %281 = vector.shape_cast %280 : vector<1x32x128xf32> to vector<32x128xf32>
    %282 = arith.mulf %281, %279 : vector<32x128xf32>
    %283 = arith.addf %264, %282 : vector<32x128xf32>
    %c125_i32_191 = arith.constant 125 : i32
    %284 = tpu.dynamic_rotate %202 by %c125_i32_191 dim 1 : vector<32x128xf32>, i32 -> vector<32x128xf32>
    %c17_192 = arith.constant 17 : index
    %c0_193 = arith.constant 0 : index
    %c0_194 = arith.constant 0 : index
    %285 = vector.load %arg6[%c17_192, %c0_193, %c0_194] : memref<29x32x128xf32, #tpu.memory_space<vmem>>, vector<1x32x128xf32>
    %286 = vector.shape_cast %285 : vector<1x32x128xf32> to vector<32x128xf32>
    %287 = arith.mulf %286, %284 : vector<32x128xf32>
    %288 = arith.addf %269, %287 : vector<32x128xf32>
    %c124_i32_195 = arith.constant 124 : i32
    %289 = tpu.dynamic_rotate %202 by %c124_i32_195 dim 1 : vector<32x128xf32>, i32 -> vector<32x128xf32>
    %c18_196 = arith.constant 18 : index
    %c0_197 = arith.constant 0 : index
    %c0_198 = arith.constant 0 : index
    %290 = vector.load %arg6[%c18_196, %c0_197, %c0_198] : memref<29x32x128xf32, #tpu.memory_space<vmem>>, vector<1x32x128xf32>
    %291 = vector.shape_cast %290 : vector<1x32x128xf32> to vector<32x128xf32>
    %292 = arith.mulf %291, %289 : vector<32x128xf32>
    %293 = arith.addf %273, %292 : vector<32x128xf32>
    %c123_i32_199 = arith.constant 123 : i32
    %294 = tpu.dynamic_rotate %202 by %c123_i32_199 dim 1 : vector<32x128xf32>, i32 -> vector<32x128xf32>
    %c19 = arith.constant 19 : index
    %c0_200 = arith.constant 0 : index
    %c0_201 = arith.constant 0 : index
    %295 = vector.load %arg6[%c19, %c0_200, %c0_201] : memref<29x32x128xf32, #tpu.memory_space<vmem>>, vector<1x32x128xf32>
    %296 = vector.shape_cast %295 : vector<1x32x128xf32> to vector<32x128xf32>
    %297 = arith.mulf %296, %294 : vector<32x128xf32>
    %298 = arith.addf %278, %297 : vector<32x128xf32>
    %c122_i32_202 = arith.constant 122 : i32
    %299 = tpu.dynamic_rotate %202 by %c122_i32_202 dim 1 : vector<32x128xf32>, i32 -> vector<32x128xf32>
    %c20 = arith.constant 20 : index
    %c0_203 = arith.constant 0 : index
    %c0_204 = arith.constant 0 : index
    %300 = vector.load %arg6[%c20, %c0_203, %c0_204] : memref<29x32x128xf32, #tpu.memory_space<vmem>>, vector<1x32x128xf32>
    %301 = vector.shape_cast %300 : vector<1x32x128xf32> to vector<32x128xf32>
    %302 = arith.mulf %301, %299 : vector<32x128xf32>
    %303 = arith.addf %283, %302 : vector<32x128xf32>
    %c121_i32_205 = arith.constant 121 : i32
    %304 = tpu.dynamic_rotate %202 by %c121_i32_205 dim 1 : vector<32x128xf32>, i32 -> vector<32x128xf32>
    %c21 = arith.constant 21 : index
    %c0_206 = arith.constant 0 : index
    %c0_207 = arith.constant 0 : index
    %305 = vector.load %arg6[%c21, %c0_206, %c0_207] : memref<29x32x128xf32, #tpu.memory_space<vmem>>, vector<1x32x128xf32>
    %306 = vector.shape_cast %305 : vector<1x32x128xf32> to vector<32x128xf32>
    %307 = arith.mulf %306, %304 : vector<32x128xf32>
    %308 = arith.addf %288, %307 : vector<32x128xf32>
    %c120_i32_208 = arith.constant 120 : i32
    %309 = tpu.dynamic_rotate %202 by %c120_i32_208 dim 1 : vector<32x128xf32>, i32 -> vector<32x128xf32>
    %c22 = arith.constant 22 : index
    %c0_209 = arith.constant 0 : index
    %c0_210 = arith.constant 0 : index
    %310 = vector.load %arg6[%c22, %c0_209, %c0_210] : memref<29x32x128xf32, #tpu.memory_space<vmem>>, vector<1x32x128xf32>
    %311 = vector.shape_cast %310 : vector<1x32x128xf32> to vector<32x128xf32>
    %312 = arith.mulf %311, %309 : vector<32x128xf32>
    %313 = arith.addf %293, %312 : vector<32x128xf32>
    %c119_i32_211 = arith.constant 119 : i32
    %314 = tpu.dynamic_rotate %202 by %c119_i32_211 dim 1 : vector<32x128xf32>, i32 -> vector<32x128xf32>
    %c23 = arith.constant 23 : index
    %c0_212 = arith.constant 0 : index
    %c0_213 = arith.constant 0 : index
    %315 = vector.load %arg6[%c23, %c0_212, %c0_213] : memref<29x32x128xf32, #tpu.memory_space<vmem>>, vector<1x32x128xf32>
    %316 = vector.shape_cast %315 : vector<1x32x128xf32> to vector<32x128xf32>
    %317 = arith.mulf %316, %314 : vector<32x128xf32>
    %318 = arith.addf %298, %317 : vector<32x128xf32>
    %c118_i32 = arith.constant 118 : i32
    %319 = tpu.dynamic_rotate %202 by %c118_i32 dim 1 : vector<32x128xf32>, i32 -> vector<32x128xf32>
    %c24 = arith.constant 24 : index
    %c0_214 = arith.constant 0 : index
    %c0_215 = arith.constant 0 : index
    %320 = vector.load %arg6[%c24, %c0_214, %c0_215] : memref<29x32x128xf32, #tpu.memory_space<vmem>>, vector<1x32x128xf32>
    %321 = vector.shape_cast %320 : vector<1x32x128xf32> to vector<32x128xf32>
    %322 = arith.mulf %321, %319 : vector<32x128xf32>
    %323 = arith.addf %303, %322 : vector<32x128xf32>
    %c117_i32 = arith.constant 117 : i32
    %324 = tpu.dynamic_rotate %202 by %c117_i32 dim 1 : vector<32x128xf32>, i32 -> vector<32x128xf32>
    %c25 = arith.constant 25 : index
    %c0_216 = arith.constant 0 : index
    %c0_217 = arith.constant 0 : index
    %325 = vector.load %arg6[%c25, %c0_216, %c0_217] : memref<29x32x128xf32, #tpu.memory_space<vmem>>, vector<1x32x128xf32>
    %326 = vector.shape_cast %325 : vector<1x32x128xf32> to vector<32x128xf32>
    %327 = arith.mulf %326, %324 : vector<32x128xf32>
    %328 = arith.addf %308, %327 : vector<32x128xf32>
    %c116_i32 = arith.constant 116 : i32
    %329 = tpu.dynamic_rotate %202 by %c116_i32 dim 1 : vector<32x128xf32>, i32 -> vector<32x128xf32>
    %c26 = arith.constant 26 : index
    %c0_218 = arith.constant 0 : index
    %c0_219 = arith.constant 0 : index
    %330 = vector.load %arg6[%c26, %c0_218, %c0_219] : memref<29x32x128xf32, #tpu.memory_space<vmem>>, vector<1x32x128xf32>
    %331 = vector.shape_cast %330 : vector<1x32x128xf32> to vector<32x128xf32>
    %332 = arith.mulf %331, %329 : vector<32x128xf32>
    %333 = arith.addf %313, %332 : vector<32x128xf32>
    %c115_i32 = arith.constant 115 : i32
    %334 = tpu.dynamic_rotate %202 by %c115_i32 dim 1 : vector<32x128xf32>, i32 -> vector<32x128xf32>
    %c27 = arith.constant 27 : index
    %c0_220 = arith.constant 0 : index
    %c0_221 = arith.constant 0 : index
    %335 = vector.load %arg6[%c27, %c0_220, %c0_221] : memref<29x32x128xf32, #tpu.memory_space<vmem>>, vector<1x32x128xf32>
    %336 = vector.shape_cast %335 : vector<1x32x128xf32> to vector<32x128xf32>
    %337 = arith.mulf %336, %334 : vector<32x128xf32>
    %338 = arith.addf %318, %337 : vector<32x128xf32>
    %c114_i32 = arith.constant 114 : i32
    %339 = tpu.dynamic_rotate %202 by %c114_i32 dim 1 : vector<32x128xf32>, i32 -> vector<32x128xf32>
    %c28 = arith.constant 28 : index
    %c0_222 = arith.constant 0 : index
    %c0_223 = arith.constant 0 : index
    %340 = vector.load %arg6[%c28, %c0_222, %c0_223] : memref<29x32x128xf32, #tpu.memory_space<vmem>>, vector<1x32x128xf32>
    %341 = vector.shape_cast %340 : vector<1x32x128xf32> to vector<32x128xf32>
    %342 = arith.mulf %341, %339 : vector<32x128xf32>
    %343 = arith.addf %323, %342 : vector<32x128xf32>
    %344 = arith.addf %343, %328 : vector<32x128xf32>
    %345 = arith.addf %333, %338 : vector<32x128xf32>
    %346 = arith.addf %344, %345 : vector<32x128xf32>
    %347 = arith.addf %346, %203 : vector<32x128xf32>
    %cst_224 = arith.constant 0.000000e+00 : f32
    %348 = vector.broadcast %cst_224 : f32 to vector<32x128xf32>
    %349 = arith.select %8, %347, %348 : vector<32x128xi1>, vector<32x128xf32>
    %350 = vector.extract_strided_slice %349 {offsets = [0, 0], sizes = [32, 64], strides = [1, 1]} : vector<32x128xf32> to vector<32x64xf32>
    %351 = vector.shape_cast %350 : vector<32x64xf32> to vector<1x32x64xf32>
    %c0_225 = arith.constant 0 : index
    %c0_226 = arith.constant 0 : index
    %c0_227 = arith.constant 0 : index
    %352 = vector.load %arg8[%c0_225, %c0_226, %c0_227] : memref<1x32x64xf32, #tpu.memory_space<vmem>>, vector<1x32x64xf32>
    tpu.vector_store %arg8[%c0_225, %c0_226, %c0_227], %351 {strides = array<i32>} : memref<1x32x64xf32, #tpu.memory_space<vmem>>, vector<1x32x64xf32>,
    return
  }
  func.func @transform_0(%arg0: i32) -> (i32, i32, i32) {
    %c0_i32 = arith.constant 0 : i32
    %c0_i32_0 = arith.constant 0 : i32
    %c0_i32_1 = arith.constant 0 : i32
    return %arg0, %c0_i32, %c0_i32_0 : i32, i32, i32
  }
  func.func @transform_1(%arg0: i32) -> (i32, i32, i32) {
    %c0_i32 = arith.constant 0 : i32
    %c0_i32_0 = arith.constant 0 : i32
    %c0_i32_1 = arith.constant 0 : i32
    %c0_i32_2 = arith.constant 0 : i32
    return %c0_i32, %c0_i32_0, %c0_i32_1 : i32, i32, i32
  }
  func.func @transform_2(%arg0: i32) -> (i32, i32) {
    %c0_i32 = arith.constant 0 : i32
    %c0_i32_0 = arith.constant 0 : i32
    %c0_i32_1 = arith.constant 0 : i32
    return %c0_i32, %c0_i32_0 : i32, i32
  }
  func.func @transform_3(%arg0: i32) -> (i32, i32, i32) {
    %c0_i32 = arith.constant 0 : i32
    %c0_i32_0 = arith.constant 0 : i32
    %c0_i32_1 = arith.constant 0 : i32
    %c0_i32_2 = arith.constant 0 : i32
    return %c0_i32, %c0_i32_0, %c0_i32_1 : i32, i32, i32
  }
  func.func @transform_4(%arg0: i32) -> (i32, i32) {
    %c0_i32 = arith.constant 0 : i32
    %c0_i32_0 = arith.constant 0 : i32
    %c0_i32_1 = arith.constant 0 : i32
    return %c0_i32, %c0_i32_0 : i32, i32
  }
  func.func @transform_5(%arg0: i32) -> (i32, i32, i32) {
    %c0_i32 = arith.constant 0 : i32
    %c0_i32_0 = arith.constant 0 : i32
    %c0_i32_1 = arith.constant 0 : i32
    %c0_i32_2 = arith.constant 0 : i32
    return %c0_i32, %c0_i32_0, %c0_i32_1 : i32, i32, i32
  }
  func.func @transform_6(%arg0: i32) -> (i32, i32) {
    %c0_i32 = arith.constant 0 : i32
    %c0_i32_0 = arith.constant 0 : i32
    %c0_i32_1 = arith.constant 0 : i32
    return %c0_i32, %c0_i32_0 : i32, i32
  }
  func.func @transform_7(%arg0: i32) -> (i32, i32, i32) {
    %c0_i32 = arith.constant 0 : i32
    %c0_i32_0 = arith.constant 0 : i32
    %c0_i32_1 = arith.constant 0 : i32
    return %arg0, %c0_i32, %c0_i32_0 : i32, i32, i32
  }
}

</mosaic_0001>

<llo_original>
// kernel: _lambda_.1
$region0: #{_lambda_.1}
  #allocation0 [shape = 'u32[]', space=smem, size = 0x4, offset = 0x4, fixed_abs, tag = 'smem constant byte address 0x4 - core index']
  #allocation1 [shape = 'u32[144,128]{1,0:T(1,128)}', space=vmem, size = 0x12000, scoped, tag = 'internal scratch']
  #allocation2 [shape = 'f32[32,128]{1,0:T(8,128)}', space=vmem, size = 0x4000, scoped, tag = 'scratch operand']
  %s0 = inlined_call_operand.vmem [shape: f32[2,32,64], index: 0, kind: input, shape index: {}]
  %s1 = inlined_call_operand.vmem [shape: f32[19,32,128], index: 1, kind: input, shape index: {}]
  %s2 = inlined_call_operand.vmem [shape: f32[32,128], index: 2, kind: input, shape index: {}]
  %s3 = inlined_call_operand.vmem [shape: f32[19,32,128], index: 3, kind: input, shape index: {}]
  %s4 = inlined_call_operand.vmem [shape: f32[32,128], index: 4, kind: input, shape index: {}]
  %s5 = inlined_call_operand.vmem [shape: f32[29,32,128], index: 5, kind: input, shape index: {}]
  %s6 = inlined_call_operand.vmem [shape: f32[32,128], index: 6, kind: input, shape index: {}]
  %s7 = inlined_call_operand.hbm [shape: f32[2,32,64], index: 7, kind: output, shape index: {}]
  %s8 = sld [smem:[#allocation0]]
  $region61: #{_lambda_.1} parent=0
    _
  %s10 = ssub.s32 1, %s8
  %s11 = scalar_select 0, %s10, %s8
  $region1: #{_lambda_.1} parent=0
    #allocation3 [shape = 'u8[32768]{0}', space=vmem, size = 0x8000, scoped, tag = 'output window, operand 0']
    #allocation4 [shape = 's32[2]{0}', space=sflag, size = 0x8, scoped, tag = 'scoped memory for _lambda_.1']
    %12 = vsyncpa [#allocation4], 0
    %s13 = scalar_lea.sflag [#allocation4], 1
    %14 = vsyncpa %s13, 0
    loop: start=0, step=1, limit=4
    $region2: #{_lambda_.1} parent=1 // loop_pre_header
      _
    $region3: #{_lambda_.1} parent=1 // loop_header
      %s16 = sphi 0, %s20
      %p17 = scmp.ge.s32.totalorder %s16, 4
      %s26 = sphi 0, %s28
      %s29 = sphi 0, %s26
      %s30 = sphi 0, %s29
      %s46 = sphi 0, %s30
      %s50 = sphi 0, %s50
      %s52 = sphi 0, %s50
      %s53 = sphi 0, %s52
      %s67 = sphi 0, %s53
      %s71 = sphi 0, %s71
      %s73 = sphi 0, %s71
      %s74 = sphi 0, %s73
      %s88 = sphi 0, %s74
      %s92 = sphi 0, %s92
      %s94 = sphi 0, %s92
      %s95 = sphi 0, %s94
      %s109 = sphi 0, %s95
      %s113 = sphi 0, %s113
      %s115 = sphi 0, %s113
      %s116 = sphi 0, %s115
      %s130 = sphi 0, %s116
      %s134 = sphi 0, %s134
      %s136 = sphi 0, %s134
      %s137 = sphi 0, %s136
      %s151 = sphi 0, %s137
      %s155 = sphi 0, %s155
      %s157 = sphi 0, %s155
      %s158 = sphi 0, %s157
      %s172 = sphi 0, %s158
      %s178 = sphi 0, %s180
      %s181 = sphi 0, %s178
      %s182 = sphi 0, %s181
      %s198 = sphi 0, %s182
    $region4: #{_lambda_.1} parent=1 // loop_header_branch
      %19 = sbr.rel (%p17) target = $region8
    $region5: #{_lambda_.1} parent=1 // loop_body
      %s21 = ssub.s32 %s16, 1
      %s22 = ssub.s32 %s16, 2
      %s23 = sadd.s32 %s16, 1
      %s24 = ssub.s32 %s16, %s23
      %p25 = scmp.eq.s32.totalorder %s24, 0
      %s27 = sadd.s32 %s26, 1
      %s28 = scalar_select %p25, %s26, %s27
      %p31 = pneg %p25
      %p32 = scmp.eq.s32.totalorder %s16, 1
      %p33 = por %p31, %p32
      %p34 = scmp.ne.s32.totalorder %s26, %s29
      %p35 = scmp.eq.s32.totalorder %s16, 0
      %p36 = por %p34, %p35
      %p37 = scmp.ne.s32.totalorder %s26, %s29
      %p38 = scmp.eq.s32.totalorder %s21, 1
      %p39 = por %p37, %p38
      %p40 = scmp.ne.s32.totalorder %s29, %s30
      %p41 = scmp.eq.s32.totalorder %s21, 0
      %p42 = por %p40, %p41
      %p43 = scmp.ne.s32.totalorder %s29, %s30
      %p44 = scmp.eq.s32.totalorder %s22, 1
      %p45 = por %p43, %p44
      %p47 = scmp.ne.s32.totalorder %s30, %s46
      %p48 = scmp.eq.s32.totalorder %s22, 0
      %p49 = por %p47, %p48
      %s51 = sadd.s32 %s50, 1
      %p54 = scmp.eq.s32.totalorder %s16, 1
      %p55 = scmp.ne.s32.totalorder %s50, %s52
      %p56 = scmp.eq.s32.totalorder %s16, 0
      %p57 = por %p55, %p56
      %p58 = scmp.ne.s32.totalorder %s50, %s52
      %p59 = scmp.eq.s32.totalorder %s21, 1
      %p60 = por %p58, %p59
      %p61 = scmp.ne.s32.totalorder %s52, %s53
      %p62 = scmp.eq.s32.totalorder %s21, 0
      %p63 = por %p61, %p62
      %p64 = scmp.ne.s32.totalorder %s52, %s53
      %p65 = scmp.eq.s32.totalorder %s22, 1
      %p66 = por %p64, %p65
      %p68 = scmp.ne.s32.totalorder %s53, %s67
      %p69 = scmp.eq.s32.totalorder %s22, 0
      %p70 = por %p68, %p69
      %s72 = sadd.s32 %s71, 1
      %p75 = scmp.eq.s32.totalorder %s16, 1
      %p76 = scmp.ne.s32.totalorder %s71, %s73
      %p77 = scmp.eq.s32.totalorder %s16, 0
      %p78 = por %p76, %p77
      %p79 = scmp.ne.s32.totalorder %s71, %s73
      %p80 = scmp.eq.s32.totalorder %s21, 1
      %p81 = por %p79, %p80
      %p82 = scmp.ne.s32.totalorder %s73, %s74
      %p83 = scmp.eq.s32.totalorder %s21, 0
      %p84 = por %p82, %p83
      %p85 = scmp.ne.s32.totalorder %s73, %s74
      %p86 = scmp.eq.s32.totalorder %s22, 1
      %p87 = por %p85, %p86
      %p89 = scmp.ne.s32.totalorder %s74, %s88
      %p90 = scmp.eq.s32.totalorder %s22, 0
      %p91 = por %p89, %p90
      %s93 = sadd.s32 %s92, 1
      %p96 = scmp.eq.s32.totalorder %s16, 1
      %p97 = scmp.ne.s32.totalorder %s92, %s94
      %p98 = scmp.eq.s32.totalorder %s16, 0
      %p99 = por %p97, %p98
      %p100 = scmp.ne.s32.totalorder %s92, %s94
      %p101 = scmp.eq.s32.totalorder %s21, 1
      %p102 = por %p100, %p101
      %p103 = scmp.ne.s32.totalorder %s94, %s95
      %p104 = scmp.eq.s32.totalorder %s21, 0
      %p105 = por %p103, %p104
      %p106 = scmp.ne.s32.totalorder %s94, %s95
      %p107 = scmp.eq.s32.totalorder %s22, 1
      %p108 = por %p106, %p107
      %p110 = scmp.ne.s32.totalorder %s95, %s109
      %p111 = scmp.eq.s32.totalorder %s22, 0
      %p112 = por %p110, %p111
      %s114 = sadd.s32 %s113, 1
      %p117 = scmp.eq.s32.totalorder %s16, 1
      %p118 = scmp.ne.s32.totalorder %s113, %s115
      %p119 = scmp.eq.s32.totalorder %s16, 0
      %p120 = por %p118, %p119
      %p121 = scmp.ne.s32.totalorder %s113, %s115
      %p122 = scmp.eq.s32.totalorder %s21, 1
      %p123 = por %p121, %p122
      %p124 = scmp.ne.s32.totalorder %s115, %s116
      %p125 = scmp.eq.s32.totalorder %s21, 0
      %p126 = por %p124, %p125
      %p127 = scmp.ne.s32.totalorder %s115, %s116
      %p128 = scmp.eq.s32.totalorder %s22, 1
      %p129 = por %p127, %p128
      %p131 = scmp.ne.s32.totalorder %s116, %s130
      %p132 = scmp.eq.s32.totalorder %s22, 0
      %p133 = por %p131, %p132
      %s135 = sadd.s32 %s134, 1
      %p138 = scmp.eq.s32.totalorder %s16, 1
      %p139 = scmp.ne.s32.totalorder %s134, %s136
      %p140 = scmp.eq.s32.totalorder %s16, 0
      %p141 = por %p139, %p140
      %p142 = scmp.ne.s32.totalorder %s134, %s136
      %p143 = scmp.eq.s32.totalorder %s21, 1
      %p144 = por %p142, %p143
      %p145 = scmp.ne.s32.totalorder %s136, %s137
      %p146 = scmp.eq.s32.totalorder %s21, 0
      %p147 = por %p145, %p146
      %p148 = scmp.ne.s32.totalorder %s136, %s137
      %p149 = scmp.eq.s32.totalorder %s22, 1
      %p150 = por %p148, %p149
      %p152 = scmp.ne.s32.totalorder %s137, %s151
      %p153 = scmp.eq.s32.totalorder %s22, 0
      %p154 = por %p152, %p153
      %s156 = sadd.s32 %s155, 1
      %p159 = scmp.eq.s32.totalorder %s16, 1
      %p160 = scmp.ne.s32.totalorder %s155, %s157
      %p161 = scmp.eq.s32.totalorder %s16, 0
      %p162 = por %p160, %p161
      %p163 = scmp.ne.s32.totalorder %s155, %s157
      %p164 = scmp.eq.s32.totalorder %s21, 1
      %p165 = por %p163, %p164
      %p166 = scmp.ne.s32.totalorder %s157, %s158
      %p167 = scmp.eq.s32.totalorder %s21, 0
      %p168 = por %p166, %p167
      %p169 = scmp.ne.s32.totalorder %s157, %s158
      %p170 = scmp.eq.s32.totalorder %s22, 1
      %p171 = por %p169, %p170
      %p173 = scmp.ne.s32.totalorder %s158, %s172
      %p174 = scmp.eq.s32.totalorder %s22, 0
      %p175 = por %p173, %p174
      %s176 = ssub.s32 %s16, %s23
      %p177 = scmp.eq.s32.totalorder %s176, 0
      %s179 = sadd.s32 %s178, 1
      %s180 = scalar_select %p177, %s178, %s179
      %p183 = pneg %p177
      %p184 = scmp.eq.s32.totalorder %s16, 1
      %p185 = por %p183, %p184
      %p186 = scmp.ne.s32.totalorder %s178, %s181
      %p187 = scmp.eq.s32.totalorder %s16, 0
      %p188 = por %p186, %p187
      %p189 = scmp.ne.s32.totalorder %s178, %s181
      %p190 = scmp.eq.s32.totalorder %s21, 1
      %p191 = por %p189, %p190
      %p192 = scmp.ne.s32.totalorder %s181, %s182
      %p193 = scmp.eq.s32.totalorder %s21, 0
      %p194 = por %p192, %p193
      %p195 = scmp.ne.s32.totalorder %s181, %s182
      %p196 = scmp.eq.s32.totalorder %s22, 1
      %p197 = por %p195, %p196
      %p199 = scmp.ne.s32.totalorder %s182, %s198
      %p200 = scmp.eq.s32.totalorder %s22, 0
      %p201 = por %p199, %p200
      %p202 = scmp.le.s32.totalorder 1, %s16
      %p203 = scmp.lt.s32.totalorder %s16, 3
      %p204 = pnand %p202, %p203
      %p205 = pneg %p204
      // Predicated region
      $region9: #{_lambda_.1} parent=5 // pred_check
        _
      $region10: #{_lambda_.1} parent=5 // pred_check_branch
        %207 = sbr.rel (%p204) target = $region12
      $region11: #{_lambda_.1} parent=5 // pred_region
        %s208 = ssub.s32 %s16, 1
        // Predicated region
        $region13: #{_lambda_.1} parent=11 // pred_check
          %p209 = pneg %p63
        $region14: #{_lambda_.1} parent=11 // pred_check_branch
          %211 = sbr.rel (%p209) target = $region16
        $region15: #{_lambda_.1} parent=11 // pred_region
          _
        $region16: #{_lambda_.1} parent=11 // pred_fallthru
          _
        // Predicated region
        $region17: #{_lambda_.1} parent=11 // pred_check
          %p212 = pneg %p84
        $region18: #{_lambda_.1} parent=11 // pred_check_branch
          %214 = sbr.rel (%p212) target = $region20
        $region19: #{_lambda_.1} parent=11 // pred_region
          _
        $region20: #{_lambda_.1} parent=11 // pred_fallthru
          _
        // Predicated region
        $region21: #{_lambda_.1} parent=11 // pred_check
          %p215 = pneg %p105
        $region22: #{_lambda_.1} parent=11 // pred_check_branch
          %217 = sbr.rel (%p215) target = $region24
        $region23: #{_lambda_.1} parent=11 // pred_region
          _
        $region24: #{_lambda_.1} parent=11 // pred_fallthru
          _
        // Predicated region
        $region25: #{_lambda_.1} parent=11 // pred_check
          %p218 = pneg %p126
        $region26: #{_lambda_.1} parent=11 // pred_check_branch
          %220 = sbr.rel (%p218) target = $region28
        $region27: #{_lambda_.1} parent=11 // pred_region
          _
        $region28: #{_lambda_.1} parent=11 // pred_fallthru
          _
        // Predicated region
        $region29: #{_lambda_.1} parent=11 // pred_check
          %p221 = pneg %p147
        $region30: #{_lambda_.1} parent=11 // pred_check_branch
          %223 = sbr.rel (%p221) target = $region32
        $region31: #{_lambda_.1} parent=11 // pred_region
          _
        $region32: #{_lambda_.1} parent=11 // pred_fallthru
          _
        // Predicated region
        $region33: #{_lambda_.1} parent=11 // pred_check
          %p224 = pneg %p168
        $region34: #{_lambda_.1} parent=11 // pred_check_branch
          %226 = sbr.rel (%p224) target = $region36
        $region35: #{_lambda_.1} parent=11 // pred_region
          _
        $region36: #{_lambda_.1} parent=11 // pred_fallthru
          _
      $region12: #{_lambda_.1} parent=5 // pred_fallthru
        _
      %p227 = scmp.lt.s32.totalorder %s16, 2
      // Predicated region
      $region37: #{_lambda_.1} parent=5 // pred_check
        %p228 = pneg %p227
      $region38: #{_lambda_.1} parent=5 // pred_check_branch
        %230 = sbr.rel (%p228) target = $region40
      $region39: #{_lambda_.1} parent=5 // pred_region
        // Predicated region
        $region41: #{_lambda_.1} parent=39 // pred_check
          %p231 = pneg %p36
        $region42: #{_lambda_.1} parent=39 // pred_check_branch
          %233 = sbr.rel (%p231) target = $region44
        $region43: #{_lambda_.1} parent=39 // pred_region
          %p234 = scmp.lt.s32.totalorder %s16, 1
          %s235 = scalar_select %p234, %s16, 1
          %s236 = smul.addr %s235, 4
          %s237 = smul.addr %s236, 8
          %s238 = scalar_lea.vmem %s0, %s237
        $region44: #{_lambda_.1} parent=39 // pred_fallthru
          _
      $region40: #{_lambda_.1} parent=5 // pred_fallthru
        _
      %p239 = scmp.le.s32.totalorder 1, %s16
      %p240 = scmp.lt.s32.totalorder %s16, 3
      %p241 = pnand %p239, %p240
      %p242 = pneg %p241
      // Predicated region
      $region45: #{_lambda_.1} parent=5 // pred_check
        _
      $region46: #{_lambda_.1} parent=5 // pred_check_branch
        %244 = sbr.rel (%p241) target = $region48
      $region47: #{_lambda_.1} parent=5 // pred_region
        %s245 = ssub.s32 %s16, 1
        %p246 = scmp.lt.s32.totalorder %s21, 1
        %s247 = scalar_select %p246, %s21, 1
        %s248 = smul.addr %s247, 4
        %s249 = smul.addr %s248, 8
        %s250 = scalar_lea.vmem %s0, %s249
        %p251 = pneg %p42
        %p252 = pneg %p39
        %p253 = pneg %p63
        %p254 = pneg %p60
        %p255 = pneg %p84
        %p256 = pneg %p81
        %p257 = pneg %p105
        %p258 = pneg %p102
        %p259 = pneg %p126
        %p260 = pneg %p123
        %p261 = pneg %p147
        %p262 = pneg %p144
        %p263 = pneg %p168
        %p264 = pneg %p165
        %p265 = pneg %p194
        %p266 = pneg %p191
        %s267 = sand.u32 %s181, 1
        %s268 = scalar_lea.sflag [#allocation4], %s267
        %s269 = sand.u32 %s181, 1
        %s270 = smul.addr %s269, 32
        %s271 = scalar_lea.vmem [#allocation3], %s270
        %p272 = scmp.lt.s32.totalorder %s21, 1
        %s273 = scalar_select %p272, %s21, 1
        %s274 = smul.addr %s273, 4
        %s275 = smul.addr %s274, 8
        %s276 = scalar_lea.vmem %s0, %s275
        %vm277 = vcmask 1048064
        %278 = vst.msk [vmem:[#allocation2] sm:$0xff] %vm277, 0.0
        %279 = vst.msk [vmem:[#allocation2 + $0x8] sm:$0xff] %vm277, 0.0
        %280 = vst.msk [vmem:[#allocation2 + $0x10] sm:$0xff] %vm277, 0.0
        %281 = vst.msk [vmem:[#allocation2 + $0x18] sm:$0xff] %vm277, 0.0
        %v282 = vld [vmem:[%s276] sm:$0xff]
        %v283 = vld [vmem:[%s276 + $0x8] sm:$0xff]
        %v284 = vld [vmem:[%s276 + $0x10] sm:$0xff]
        %v285 = vld [vmem:[%s276 + $0x18] sm:$0xff]
        %vm286 = vcmask 523264
        %287 = vst.msk [vmem:[#allocation2] sm:$0xff] %vm286, %v282
        %288 = vst.msk [vmem:[#allocation2 + $0x8] sm:$0xff] %vm286, %v283
        %289 = vst.msk [vmem:[#allocation2 + $0x10] sm:$0xff] %vm286, %v284
        %290 = vst.msk [vmem:[#allocation2 + $0x18] sm:$0xff] %vm286, %v285
        %v291 = vld [vmem:[#allocation2] sm:$0xff]
        %v292 = vld [vmem:[#allocation2 + $0x8] sm:$0xff]
        %v293 = vld [vmem:[#allocation2 + $0x10] sm:$0xff]
        %v294 = vld [vmem:[#allocation2 + $0x18] sm:$0xff]
        %v295 = vlaneseq
        %v296 = vand.u32 %v295, 127
        %vm297 = vcmp.lt.s32.totalorder %v296, 64
        %v298 = vld [vmem:[%s2] sm:$0xff]
        %v299 = vld [vmem:[%s2 + $0x8] sm:$0xff]
        %v300 = vld [vmem:[%s2 + $0x10] sm:$0xff]
        %v301 = vld [vmem:[%s2 + $0x18] sm:$0xff]
        %302 = vrot.lane.b32.xlu0 %v291, 9
        %v303 = vpop.permute.xlu0 %302
        %304 = vrot.lane.b32.xlu0 %v292, 9
        %v305 = vpop.permute.xlu0 %304
        %306 = vrot.lane.b32.xlu0 %v293, 9
        %v307 = vpop.permute.xlu0 %306
        %308 = vrot.lane.b32.xlu0 %v294, 9
        %v309 = vpop.permute.xlu0 %308
        %v310 = vld [vmem:[%s1] sm:$0xff]
        %v311 = vld [vmem:[%s1 + $0x8] sm:$0xff]
        %v312 = vld [vmem:[%s1 + $0x10] sm:$0xff]
        %v313 = vld [vmem:[%s1 + $0x18] sm:$0xff]
        %v314 = vmul.f32 %v310, %v303
        %v315 = vmul.f32 %v311, %v305
        %v316 = vmul.f32 %v312, %v307
        %v317 = vmul.f32 %v313, %v309
        %318 = vrot.lane.b32.xlu0 %v291, 8
        %v319 = vpop.permute.xlu0 %318
        %320 = vrot.lane.b32.xlu0 %v292, 8
        %v321 = vpop.permute.xlu0 %320
        %322 = vrot.lane.b32.xlu0 %v293, 8
        %v323 = vpop.permute.xlu0 %322
        %324 = vrot.lane.b32.xlu0 %v294, 8
        %v325 = vpop.permute.xlu0 %324
        %s326 = scalar_lea.vmem %s1, 32
        %v327 = vld [vmem:[%s326] sm:$0xff]
        %v328 = vld [vmem:[%s326 + $0x8] sm:$0xff]
        %v329 = vld [vmem:[%s326 + $0x10] sm:$0xff]
        %v330 = vld [vmem:[%s326 + $0x18] sm:$0xff]
        %v331 = vmul.f32 %v327, %v319
        %v332 = vmul.f32 %v328, %v321
        %v333 = vmul.f32 %v329, %v323
        %v334 = vmul.f32 %v330, %v325
        %335 = vrot.lane.b32.xlu0 %v291, 7
        %v336 = vpop.permute.xlu0 %335
        %337 = vrot.lane.b32.xlu0 %v292, 7
        %v338 = vpop.permute.xlu0 %337
        %339 = vrot.lane.b32.xlu0 %v293, 7
        %v340 = vpop.permute.xlu0 %339
        %341 = vrot.lane.b32.xlu0 %v294, 7
        %v342 = vpop.permute.xlu0 %341
        %s343 = scalar_lea.vmem %s1, 64
        %v344 = vld [vmem:[%s343] sm:$0xff]
        %v345 = vld [vmem:[%s343 + $0x8] sm:$0xff]
        %v346 = vld [vmem:[%s343 + $0x10] sm:$0xff]
        %v347 = vld [vmem:[%s343 + $0x18] sm:$0xff]
        %v348 = vmul.f32 %v344, %v336
        %v349 = vmul.f32 %v345, %v338
        %v350 = vmul.f32 %v346, %v340
        %v351 = vmul.f32 %v347, %v342
        %352 = vrot.lane.b32.xlu0 %v291, 6
        %v353 = vpop.permute.xlu0 %352
        %354 = vrot.lane.b32.xlu0 %v292, 6
        %v355 = vpop.permute.xlu0 %354
        %356 = vrot.lane.b32.xlu0 %v293, 6
        %v357 = vpop.permute.xlu0 %356
        %358 = vrot.lane.b32.xlu0 %v294, 6
        %v359 = vpop.permute.xlu0 %358
        %s360 = scalar_lea.vmem %s1, 96
        %v361 = vld [vmem:[%s360] sm:$0xff]
        %v362 = vld [vmem:[%s360 + $0x8] sm:$0xff]
        %v363 = vld [vmem:[%s360 + $0x10] sm:$0xff]
        %v364 = vld [vmem:[%s360 + $0x18] sm:$0xff]
        %v365 = vmul.f32 %v361, %v353
        %v366 = vmul.f32 %v362, %v355
        %v367 = vmul.f32 %v363, %v357
        %v368 = vmul.f32 %v364, %v359
        %369 = vrot.lane.b32.xlu0 %v291, 5
        %v370 = vpop.permute.xlu0 %369
        %371 = vrot.lane.b32.xlu0 %v292, 5
        %v372 = vpop.permute.xlu0 %371
        %373 = vrot.lane.b32.xlu0 %v293, 5
        %v374 = vpop.permute.xlu0 %373
        %375 = vrot.lane.b32.xlu0 %v294, 5
        %v376 = vpop.permute.xlu0 %375
        %s377 = scalar_lea.vmem %s1, 128
        %v378 = vld [vmem:[%s377] sm:$0xff]
        %v379 = vld [vmem:[%s377 + $0x8] sm:$0xff]
        %v380 = vld [vmem:[%s377 + $0x10] sm:$0xff]
        %v381 = vld [vmem:[%s377 + $0x18] sm:$0xff]
        %v382 = vmul.f32 %v378, %v370
        %v383 = vmul.f32 %v379, %v372
        %v384 = vmul.f32 %v380, %v374
        %v385 = vmul.f32 %v381, %v376
        %v386 = vadd.f32 %v314, %v382
        %v387 = vadd.f32 %v315, %v383
        %v388 = vadd.f32 %v316, %v384
        %v389 = vadd.f32 %v317, %v385
        %390 = vrot.lane.b32.xlu0 %v291, 4
        %v391 = vpop.permute.xlu0 %390
        %392 = vrot.lane.b32.xlu0 %v292, 4
        %v393 = vpop.permute.xlu0 %392
        %394 = vrot.lane.b32.xlu0 %v293, 4
        %v395 = vpop.permute.xlu0 %394
        %396 = vrot.lane.b32.xlu0 %v294, 4
        %v397 = vpop.permute.xlu0 %396
        %s398 = scalar_lea.vmem %s1, 160
        %v399 = vld [vmem:[%s398] sm:$0xff]
        %v400 = vld [vmem:[%s398 + $0x8] sm:$0xff]
        %v401 = vld [vmem:[%s398 + $0x10] sm:$0xff]
        %v402 = vld [vmem:[%s398 + $0x18] sm:$0xff]
        %v403 = vmul.f32 %v399, %v391
        %v404 = vmul.f32 %v400, %v393
        %v405 = vmul.f32 %v401, %v395
        %v406 = vmul.f32 %v402, %v397
        %v407 = vadd.f32 %v331, %v403
        %v408 = vadd.f32 %v332, %v404
        %v409 = vadd.f32 %v333, %v405
        %v410 = vadd.f32 %v334, %v406
        %411 = vrot.lane.b32.xlu0 %v291, 3
        %v412 = vpop.permute.xlu0 %411
        %413 = vrot.lane.b32.xlu0 %v292, 3
        %v414 = vpop.permute.xlu0 %413
        %415 = vrot.lane.b32.xlu0 %v293, 3
        %v416 = vpop.permute.xlu0 %415
        %417 = vrot.lane.b32.xlu0 %v294, 3
        %v418 = vpop.permute.xlu0 %417
        %s419 = scalar_lea.vmem %s1, 192
        %v420 = vld [vmem:[%s419] sm:$0xff]
        %v421 = vld [vmem:[%s419 + $0x8] sm:$0xff]
        %v422 = vld [vmem:[%s419 + $0x10] sm:$0xff]
        %v423 = vld [vmem:[%s419 + $0x18] sm:$0xff]
        %v424 = vmul.f32 %v420, %v412
        %v425 = vmul.f32 %v421, %v414
        %v426 = vmul.f32 %v422, %v416
        %v427 = vmul.f32 %v423, %v418
        %v428 = vadd.f32 %v348, %v424
        %v429 = vadd.f32 %v349, %v425
        %v430 = vadd.f32 %v350, %v426
        %v431 = vadd.f32 %v351, %v427
        %432 = vrot.lane.b32.xlu0 %v291, 2
        %v433 = vpop.permute.xlu0 %432
        %434 = vrot.lane.b32.xlu0 %v292, 2
        %v435 = vpop.permute.xlu0 %434
        %436 = vrot.lane.b32.xlu0 %v293, 2
        %v437 = vpop.permute.xlu0 %436
        %438 = vrot.lane.b32.xlu0 %v294, 2
        %v439 = vpop.permute.xlu0 %438
        %s440 = scalar_lea.vmem %s1, 224
        %v441 = vld [vmem:[%s440] sm:$0xff]
        %v442 = vld [vmem:[%s440 + $0x8] sm:$0xff]
        %v443 = vld [vmem:[%s440 + $0x10] sm:$0xff]
        %v444 = vld [vmem:[%s440 + $0x18] sm:$0xff]
        %v445 = vmul.f32 %v441, %v433
        %v446 = vmul.f32 %v442, %v435
        %v447 = vmul.f32 %v443, %v437
        %v448 = vmul.f32 %v444, %v439
        %v449 = vadd.f32 %v365, %v445
        %v450 = vadd.f32 %v366, %v446
        %v451 = vadd.f32 %v367, %v447
        %v452 = vadd.f32 %v368, %v448
        %453 = vrot.lane.b32.xlu0 %v291, 1
        %v454 = vpop.permute.xlu0 %453
        %455 = vrot.lane.b32.xlu0 %v292, 1
        %v456 = vpop.permute.xlu0 %455
        %457 = vrot.lane.b32.xlu0 %v293, 1
        %v458 = vpop.permute.xlu0 %457
        %459 = vrot.lane.b32.xlu0 %v294, 1
        %v460 = vpop.permute.xlu0 %459
        %s461 = scalar_lea.vmem %s1, 256
        %v462 = vld [vmem:[%s461] sm:$0xff]
        %v463 = vld [vmem:[%s461 + $0x8] sm:$0xff]
        %v464 = vld [vmem:[%s461 + $0x10] sm:$0xff]
        %v465 = vld [vmem:[%s461 + $0x18] sm:$0xff]
        %v466 = vmul.f32 %v462, %v454
        %v467 = vmul.f32 %v463, %v456
        %v468 = vmul.f32 %v464, %v458
        %v469 = vmul.f32 %v465, %v460
        %v470 = vadd.f32 %v386, %v466
        %v471 = vadd.f32 %v387, %v467
        %v472 = vadd.f32 %v388, %v468
        %v473 = vadd.f32 %v389, %v469
        %s474 = scalar_lea.vmem %s1, 288
        %v475 = vld [vmem:[%s474] sm:$0xff]
        %v476 = vld [vmem:[%s474 + $0x8] sm:$0xff]
        %v477 = vld [vmem:[%s474 + $0x10] sm:$0xff]
        %v478 = vld [vmem:[%s474 + $0x18] sm:$0xff]
        %v479 = vmul.f32 %v475, %v291
        %v480 = vmul.f32 %v476, %v292
        %v481 = vmul.f32 %v477, %v293
        %v482 = vmul.f32 %v478, %v294
        %v483 = vadd.f32 %v407, %v479
        %v484 = vadd.f32 %v408, %v480
        %v485 = vadd.f32 %v409, %v481
        %v486 = vadd.f32 %v410, %v482
        %487 = vrot.lane.b32.xlu0 %v291, 127
        %v488 = vpop.permute.xlu0 %487
        %489 = vrot.lane.b32.xlu0 %v292, 127
        %v490 = vpop.permute.xlu0 %489
        %491 = vrot.lane.b32.xlu0 %v293, 127
        %v492 = vpop.permute.xlu0 %491
        %493 = vrot.lane.b32.xlu0 %v294, 127
        %v494 = vpop.permute.xlu0 %493
        %s495 = scalar_lea.vmem %s1, 320
        %v496 = vld [vmem:[%s495] sm:$0xff]
        %v497 = vld [vmem:[%s495 + $0x8] sm:$0xff]
        %v498 = vld [vmem:[%s495 + $0x10] sm:$0xff]
        %v499 = vld [vmem:[%s495 + $0x18] sm:$0xff]
        %v500 = vmul.f32 %v496, %v488
        %v501 = vmul.f32 %v497, %v490
        %v502 = vmul.f32 %v498, %v492
        %v503 = vmul.f32 %v499, %v494
        %v504 = vadd.f32 %v428, %v500
        %v505 = vadd.f32 %v429, %v501
        %v506 = vadd.f32 %v430, %v502
        %v507 = vadd.f32 %v431, %v503
        %508 = vrot.lane.b32.xlu0 %v291, 126
        %v509 = vpop.permute.xlu0 %508
        %510 = vrot.lane.b32.xlu0 %v292, 126
        %v511 = vpop.permute.xlu0 %510
        %512 = vrot.lane.b32.xlu0 %v293, 126
        %v513 = vpop.permute.xlu0 %512
        %514 = vrot.lane.b32.xlu0 %v294, 126
        %v515 = vpop.permute.xlu0 %514
        %s516 = scalar_lea.vmem %s1, 352
        %v517 = vld [vmem:[%s516] sm:$0xff]
        %v518 = vld [vmem:[%s516 + $0x8] sm:$0xff]
        %v519 = vld [vmem:[%s516 + $0x10] sm:$0xff]
        %v520 = vld [vmem:[%s516 + $0x18] sm:$0xff]
        %v521 = vmul.f32 %v517, %v509
        %v522 = vmul.f32 %v518, %v511
        %v523 = vmul.f32 %v519, %v513
        %v524 = vmul.f32 %v520, %v515
        %v525 = vadd.f32 %v449, %v521
        %v526 = vadd.f32 %v450, %v522
        %v527 = vadd.f32 %v451, %v523
        %v528 = vadd.f32 %v452, %v524
        %529 = vrot.lane.b32.xlu0 %v291, 125
        %v530 = vpop.permute.xlu0 %529
        %531 = vrot.lane.b32.xlu0 %v292, 125
        %v532 = vpop.permute.xlu0 %531
        %533 = vrot.lane.b32.xlu0 %v293, 125
        %v534 = vpop.permute.xlu0 %533
        %535 = vrot.lane.b32.xlu0 %v294, 125
        %v536 = vpop.permute.xlu0 %535
        %s537 = scalar_lea.vmem %s1, 384
        %v538 = vld [vmem:[%s537] sm:$0xff]
        %v539 = vld [vmem:[%s537 + $0x8] sm:$0xff]
        %v540 = vld [vmem:[%s537 + $0x10] sm:$0xff]
        %v541 = vld [vmem:[%s537 + $0x18] sm:$0xff]
        %v542 = vmul.f32 %v538, %v530
        %v543 = vmul.f32 %v539, %v532
        %v544 = vmul.f32 %v540, %v534
        %v545 = vmul.f32 %v541, %v536
        %v546 = vadd.f32 %v470, %v542
        %v547 = vadd.f32 %v471, %v543
        %v548 = vadd.f32 %v472, %v544
        %v549 = vadd.f32 %v473, %v545
        %550 = vrot.lane.b32.xlu0 %v291, 124
        %v551 = vpop.permute.xlu0 %550
        %552 = vrot.lane.b32.xlu0 %v292, 124
        %v553 = vpop.permute.xlu0 %552
        %554 = vrot.lane.b32.xlu0 %v293, 124
        %v555 = vpop.permute.xlu0 %554
        %556 = vrot.lane.b32.xlu0 %v294, 124
        %v557 = vpop.permute.xlu0 %556
        %s558 = scalar_lea.vmem %s1, 416
        %v559 = vld [vmem:[%s558] sm:$0xff]
        %v560 = vld [vmem:[%s558 + $0x8] sm:$0xff]
        %v561 = vld [vmem:[%s558 + $0x10] sm:$0xff]
        %v562 = vld [vmem:[%s558 + $0x18] sm:$0xff]
        %v563 = vmul.f32 %v559, %v551
        %v564 = vmul.f32 %v560, %v553
        %v565 = vmul.f32 %v561, %v555
        %v566 = vmul.f32 %v562, %v557
        %v567 = vadd.f32 %v483, %v563
        %v568 = vadd.f32 %v484, %v564
        %v569 = vadd.f32 %v485, %v565
        %v570 = vadd.f32 %v486, %v566
        %571 = vrot.lane.b32.xlu0 %v291, 123
        %v572 = vpop.permute.xlu0 %571
        %573 = vrot.lane.b32.xlu0 %v292, 123
        %v574 = vpop.permute.xlu0 %573
        %575 = vrot.lane.b32.xlu0 %v293, 123
        %v576 = vpop.permute.xlu0 %575
        %577 = vrot.lane.b32.xlu0 %v294, 123
        %v578 = vpop.permute.xlu0 %577
        %s579 = scalar_lea.vmem %s1, 448
        %v580 = vld [vmem:[%s579] sm:$0xff]
        %v581 = vld [vmem:[%s579 + $0x8] sm:$0xff]
        %v582 = vld [vmem:[%s579 + $0x10] sm:$0xff]
        %v583 = vld [vmem:[%s579 + $0x18] sm:$0xff]
        %v584 = vmul.f32 %v580, %v572
        %v585 = vmul.f32 %v581, %v574
        %v586 = vmul.f32 %v582, %v576
        %v587 = vmul.f32 %v583, %v578
        %v588 = vadd.f32 %v504, %v584
        %v589 = vadd.f32 %v505, %v585
        %v590 = vadd.f32 %v506, %v586
        %v591 = vadd.f32 %v507, %v587
        %592 = vrot.lane.b32.xlu0 %v291, 122
        %v593 = vpop.permute.xlu0 %592
        %594 = vrot.lane.b32.xlu0 %v292, 122
        %v595 = vpop.permute.xlu0 %594
        %596 = vrot.lane.b32.xlu0 %v293, 122
        %v597 = vpop.permute.xlu0 %596
        %598 = vrot.lane.b32.xlu0 %v294, 122
        %v599 = vpop.permute.xlu0 %598
        %s600 = scalar_lea.vmem %s1, 480
        %v601 = vld [vmem:[%s600] sm:$0xff]
        %v602 = vld [vmem:[%s600 + $0x8] sm:$0xff]
        %v603 = vld [vmem:[%s600 + $0x10] sm:$0xff]
        %v604 = vld [vmem:[%s600 + $0x18] sm:$0xff]
        %v605 = vmul.f32 %v601, %v593
        %v606 = vmul.f32 %v602, %v595
        %v607 = vmul.f32 %v603, %v597
        %v608 = vmul.f32 %v604, %v599
        %v609 = vadd.f32 %v525, %v605
        %v610 = vadd.f32 %v526, %v606
        %v611 = vadd.f32 %v527, %v607
        %v612 = vadd.f32 %v528, %v608
        %613 = vrot.lane.b32.xlu0 %v291, 121
        %v614 = vpop.permute.xlu0 %613
        %615 = vrot.lane.b32.xlu0 %v292, 121
        %v616 = vpop.permute.xlu0 %615
        %617 = vrot.lane.b32.xlu0 %v293, 121
        %v618 = vpop.permute.xlu0 %617
        %619 = vrot.lane.b32.xlu0 %v294, 121
        %v620 = vpop.permute.xlu0 %619
        %s621 = scalar_lea.vmem %s1, 512
        %v622 = vld [vmem:[%s621] sm:$0xff]
        %v623 = vld [vmem:[%s621 + $0x8] sm:$0xff]
        %v624 = vld [vmem:[%s621 + $0x10] sm:$0xff]
        %v625 = vld [vmem:[%s621 + $0x18] sm:$0xff]
        %v626 = vmul.f32 %v622, %v614
        %v627 = vmul.f32 %v623, %v616
        %v628 = vmul.f32 %v624, %v618
        %v629 = vmul.f32 %v625, %v620
        %v630 = vadd.f32 %v546, %v626
        %v631 = vadd.f32 %v547, %v627
        %v632 = vadd.f32 %v548, %v628
        %v633 = vadd.f32 %v549, %v629
        %634 = vrot.lane.b32.xlu0 %v291, 120
        %v635 = vpop.permute.xlu0 %634
        %636 = vrot.lane.b32.xlu0 %v292, 120
        %v637 = vpop.permute.xlu0 %636
        %638 = vrot.lane.b32.xlu0 %v293, 120
        %v639 = vpop.permute.xlu0 %638
        %640 = vrot.lane.b32.xlu0 %v294, 120
        %v641 = vpop.permute.xlu0 %640
        %s642 = scalar_lea.vmem %s1, 544
        %v643 = vld [vmem:[%s642] sm:$0xff]
        %v644 = vld [vmem:[%s642 + $0x8] sm:$0xff]
        %v645 = vld [vmem:[%s642 + $0x10] sm:$0xff]
        %v646 = vld [vmem:[%s642 + $0x18] sm:$0xff]
        %v647 = vmul.f32 %v643, %v635
        %v648 = vmul.f32 %v644, %v637
        %v649 = vmul.f32 %v645, %v639
        %v650 = vmul.f32 %v646, %v641
        %v651 = vadd.f32 %v567, %v647
        %v652 = vadd.f32 %v568, %v648
        %v653 = vadd.f32 %v569, %v649
        %v654 = vadd.f32 %v570, %v650
        %655 = vrot.lane.b32.xlu0 %v291, 119
        %v656 = vpop.permute.xlu0 %655
        %657 = vrot.lane.b32.xlu0 %v292, 119
        %v658 = vpop.permute.xlu0 %657
        %659 = vrot.lane.b32.xlu0 %v293, 119
        %v660 = vpop.permute.xlu0 %659
        %661 = vrot.lane.b32.xlu0 %v294, 119
        %v662 = vpop.permute.xlu0 %661
        %s663 = scalar_lea.vmem %s1, 576
        %v664 = vld [vmem:[%s663] sm:$0xff]
        %v665 = vld [vmem:[%s663 + $0x8] sm:$0xff]
        %v666 = vld [vmem:[%s663 + $0x10] sm:$0xff]
        %v667 = vld [vmem:[%s663 + $0x18] sm:$0xff]
        %v668 = vmul.f32 %v664, %v656
        %v669 = vmul.f32 %v665, %v658
        %v670 = vmul.f32 %v666, %v660
        %v671 = vmul.f32 %v667, %v662
        %v672 = vadd.f32 %v588, %v668
        %v673 = vadd.f32 %v589, %v669
        %v674 = vadd.f32 %v590, %v670
        %v675 = vadd.f32 %v591, %v671
        %v676 = vadd.f32 %v630, %v651
        %v677 = vadd.f32 %v631, %v652
        %v678 = vadd.f32 %v632, %v653
        %v679 = vadd.f32 %v633, %v654
        %v680 = vadd.f32 %v672, %v609
        %v681 = vadd.f32 %v673, %v610
        %v682 = vadd.f32 %v674, %v611
        %v683 = vadd.f32 %v675, %v612
        %v684 = vadd.f32 %v676, %v680
        %v685 = vadd.f32 %v677, %v681
        %v686 = vadd.f32 %v678, %v682
        %v687 = vadd.f32 %v679, %v683
        %v688 = vadd.f32 %v684, %v298
        %v689 = vadd.f32 %v685, %v299
        %v690 = vadd.f32 %v686, %v300
        %v691 = vadd.f32 %v687, %v301
        %v692 = vsel %vm297, %v688, 0.0
        %v693 = vsel %vm297, %v689, 0.0
        %v694 = vsel %vm297, %v690, 0.0
        %v695 = vsel %vm297, %v691, 0.0
        %v696 = vld [vmem:[%s4] sm:$0xff]
        %v697 = vld [vmem:[%s4 + $0x8] sm:$0xff]
        %v698 = vld [vmem:[%s4 + $0x10] sm:$0xff]
        %v699 = vld [vmem:[%s4 + $0x18] sm:$0xff]
        %700 = vrot.lane.b32.xlu0 %v692, 9
        %v701 = vpop.permute.xlu0 %700
        %702 = vrot.lane.b32.xlu0 %v693, 9
        %v703 = vpop.permute.xlu0 %702
        %704 = vrot.lane.b32.xlu0 %v694, 9
        %v705 = vpop.permute.xlu0 %704
        %706 = vrot.lane.b32.xlu0 %v695, 9
        %v707 = vpop.permute.xlu0 %706
        %v708 = vld [vmem:[%s3] sm:$0xff]
        %v709 = vld [vmem:[%s3 + $0x8] sm:$0xff]
        %v710 = vld [vmem:[%s3 + $0x10] sm:$0xff]
        %v711 = vld [vmem:[%s3 + $0x18] sm:$0xff]
        %v712 = vmul.f32 %v708, %v701
        %v713 = vmul.f32 %v709, %v703
        %v714 = vmul.f32 %v710, %v705
        %v715 = vmul.f32 %v711, %v707
        %716 = vrot.lane.b32.xlu0 %v692, 8
        %v717 = vpop.permute.xlu0 %716
        %718 = vrot.lane.b32.xlu0 %v693, 8
        %v719 = vpop.permute.xlu0 %718
        %720 = vrot.lane.b32.xlu0 %v694, 8
        %v721 = vpop.permute.xlu0 %720
        %722 = vrot.lane.b32.xlu0 %v695, 8
        %v723 = vpop.permute.xlu0 %722
        %s724 = scalar_lea.vmem %s3, 32
        %v725 = vld [vmem:[%s724] sm:$0xff]
        %v726 = vld [vmem:[%s724 + $0x8] sm:$0xff]
        %v727 = vld [vmem:[%s724 + $0x10] sm:$0xff]
        %v728 = vld [vmem:[%s724 + $0x18] sm:$0xff]
        %v729 = vmul.f32 %v725, %v717
        %v730 = vmul.f32 %v726, %v719
        %v731 = vmul.f32 %v727, %v721
        %v732 = vmul.f32 %v728, %v723
        %733 = vrot.lane.b32.xlu0 %v692, 7
        %v734 = vpop.permute.xlu0 %733
        %735 = vrot.lane.b32.xlu0 %v693, 7
        %v736 = vpop.permute.xlu0 %735
        %737 = vrot.lane.b32.xlu0 %v694, 7
        %v738 = vpop.permute.xlu0 %737
        %739 = vrot.lane.b32.xlu0 %v695, 7
        %v740 = vpop.permute.xlu0 %739
        %s741 = scalar_lea.vmem %s3, 64
        %v742 = vld [vmem:[%s741] sm:$0xff]
        %v743 = vld [vmem:[%s741 + $0x8] sm:$0xff]
        %v744 = vld [vmem:[%s741 + $0x10] sm:$0xff]
        %v745 = vld [vmem:[%s741 + $0x18] sm:$0xff]
        %v746 = vmul.f32 %v742, %v734
        %v747 = vmul.f32 %v743, %v736
        %v748 = vmul.f32 %v744, %v738
        %v749 = vmul.f32 %v745, %v740
        %750 = vrot.lane.b32.xlu0 %v692, 6
        %v751 = vpop.permute.xlu0 %750
        %752 = vrot.lane.b32.xlu0 %v693, 6
        %v753 = vpop.permute.xlu0 %752
        %754 = vrot.lane.b32.xlu0 %v694, 6
        %v755 = vpop.permute.xlu0 %754
        %756 = vrot.lane.b32.xlu0 %v695, 6
        %v757 = vpop.permute.xlu0 %756
        %s758 = scalar_lea.vmem %s3, 96
        %v759 = vld [vmem:[%s758] sm:$0xff]
        %v760 = vld [vmem:[%s758 + $0x8] sm:$0xff]
        %v761 = vld [vmem:[%s758 + $0x10] sm:$0xff]
        %v762 = vld [vmem:[%s758 + $0x18] sm:$0xff]
        %v763 = vmul.f32 %v759, %v751
        %v764 = vmul.f32 %v760, %v753
        %v765 = vmul.f32 %v761, %v755
        %v766 = vmul.f32 %v762, %v757
        %767 = vrot.lane.b32.xlu0 %v692, 5
        %v768 = vpop.permute.xlu0 %767
        %769 = vrot.lane.b32.xlu0 %v693, 5
        %v770 = vpop.permute.xlu0 %769
        %771 = vrot.lane.b32.xlu0 %v694, 5
        %v772 = vpop.permute.xlu0 %771
        %773 = vrot.lane.b32.xlu0 %v695, 5
        %v774 = vpop.permute.xlu0 %773
        %s775 = scalar_lea.vmem %s3, 128
        %v776 = vld [vmem:[%s775] sm:$0xff]
        %v777 = vld [vmem:[%s775 + $0x8] sm:$0xff]
        %v778 = vld [vmem:[%s775 + $0x10] sm:$0xff]
        %v779 = vld [vmem:[%s775 + $0x18] sm:$0xff]
        %v780 = vmul.f32 %v776, %v768
        %v781 = vmul.f32 %v777, %v770
        %v782 = vmul.f32 %v778, %v772
        %v783 = vmul.f32 %v779, %v774
        %v784 = vadd.f32 %v712, %v780
        %v785 = vadd.f32 %v713, %v781
        %v786 = vadd.f32 %v714, %v782
        %v787 = vadd.f32 %v715, %v783
        %788 = vrot.lane.b32.xlu0 %v692, 4
        %v789 = vpop.permute.xlu0 %788
        %790 = vrot.lane.b32.xlu0 %v693, 4
        %v791 = vpop.permute.xlu0 %790
        %792 = vrot.lane.b32.xlu0 %v694, 4
        %v793 = vpop.permute.xlu0 %792
        %794 = vrot.lane.b32.xlu0 %v695, 4
        %v795 = vpop.permute.xlu0 %794
        %s796 = scalar_lea.vmem %s3, 160
        %v797 = vld [vmem:[%s796] sm:$0xff]
        %v798 = vld [vmem:[%s796 + $0x8] sm:$0xff]
        %v799 = vld [vmem:[%s796 + $0x10] sm:$0xff]
        %v800 = vld [vmem:[%s796 + $0x18] sm:$0xff]
        %v801 = vmul.f32 %v797, %v789
        %v802 = vmul.f32 %v798, %v791
        %v803 = vmul.f32 %v799, %v793
        %v804 = vmul.f32 %v800, %v795
        %v805 = vadd.f32 %v729, %v801
        %v806 = vadd.f32 %v730, %v802
        %v807 = vadd.f32 %v731, %v803
        %v808 = vadd.f32 %v732, %v804
        %809 = vrot.lane.b32.xlu0 %v692, 3
        %v810 = vpop.permute.xlu0 %809
        %811 = vrot.lane.b32.xlu0 %v693, 3
        %v812 = vpop.permute.xlu0 %811
        %813 = vrot.lane.b32.xlu0 %v694, 3
        %v814 = vpop.permute.xlu0 %813
        %815 = vrot.lane.b32.xlu0 %v695, 3
        %v816 = vpop.permute.xlu0 %815
        %s817 = scalar_lea.vmem %s3, 192
        %v818 = vld [vmem:[%s817] sm:$0xff]
        %v819 = vld [vmem:[%s817 + $0x8] sm:$0xff]
        %v820 = vld [vmem:[%s817 + $0x10] sm:$0xff]
        %v821 = vld [vmem:[%s817 + $0x18] sm:$0xff]
        %v822 = vmul.f32 %v818, %v810
        %v823 = vmul.f32 %v819, %v812
        %v824 = vmul.f32 %v820, %v814
        %v825 = vmul.f32 %v821, %v816
        %v826 = vadd.f32 %v746, %v822
        %v827 = vadd.f32 %v747, %v823
        %v828 = vadd.f32 %v748, %v824
        %v829 = vadd.f32 %v749, %v825
        %830 = vrot.lane.b32.xlu0 %v692, 2
        %v831 = vpop.permute.xlu0 %830
        %832 = vrot.lane.b32.xlu0 %v693, 2
        %v833 = vpop.permute.xlu0 %832
        %834 = vrot.lane.b32.xlu0 %v694, 2
        %v835 = vpop.permute.xlu0 %834
        %836 = vrot.lane.b32.xlu0 %v695, 2
        %v837 = vpop.permute.xlu0 %836
        %s838 = scalar_lea.vmem %s3, 224
        %v839 = vld [vmem:[%s838] sm:$0xff]
        %v840 = vld [vmem:[%s838 + $0x8] sm:$0xff]
        %v841 = vld [vmem:[%s838 + $0x10] sm:$0xff]
        %v842 = vld [vmem:[%s838 + $0x18] sm:$0xff]
        %v843 = vmul.f32 %v839, %v831
        %v844 = vmul.f32 %v840, %v833
        %v845 = vmul.f32 %v841, %v835
        %v846 = vmul.f32 %v842, %v837
        %v847 = vadd.f32 %v763, %v843
        %v848 = vadd.f32 %v764, %v844
        %v849 = vadd.f32 %v765, %v845
        %v850 = vadd.f32 %v766, %v846
        %851 = vrot.lane.b32.xlu0 %v692, 1
        %v852 = vpop.permute.xlu0 %851
        %853 = vrot.lane.b32.xlu0 %v693, 1
        %v854 = vpop.permute.xlu0 %853
        %855 = vrot.lane.b32.xlu0 %v694, 1
        %v856 = vpop.permute.xlu0 %855
        %857 = vrot.lane.b32.xlu0 %v695, 1
        %v858 = vpop.permute.xlu0 %857
        %s859 = scalar_lea.vmem %s3, 256
        %v860 = vld [vmem:[%s859] sm:$0xff]
        %v861 = vld [vmem:[%s859 + $0x8] sm:$0xff]
        %v862 = vld [vmem:[%s859 + $0x10] sm:$0xff]
        %v863 = vld [vmem:[%s859 + $0x18] sm:$0xff]
        %v864 = vmul.f32 %v860, %v852
        %v865 = vmul.f32 %v861, %v854
        %v866 = vmul.f32 %v862, %v856
        %v867 = vmul.f32 %v863, %v858
        %v868 = vadd.f32 %v784, %v864
        %v869 = vadd.f32 %v785, %v865
        %v870 = vadd.f32 %v786, %v866
        %v871 = vadd.f32 %v787, %v867
        %s872 = scalar_lea.vmem %s3, 288
        %v873 = vld [vmem:[%s872] sm:$0xff]
        %v874 = vld [vmem:[%s872 + $0x8] sm:$0xff]
        %v875 = vld [vmem:[%s872 + $0x10] sm:$0xff]
        %v876 = vld [vmem:[%s872 + $0x18] sm:$0xff]
        %v877 = vmul.f32 %v873, %v692
        %v878 = vmul.f32 %v874, %v693
        %v879 = vmul.f32 %v875, %v694
        %v880 = vmul.f32 %v876, %v695
        %v881 = vadd.f32 %v805, %v877
        %v882 = vadd.f32 %v806, %v878
        %v883 = vadd.f32 %v807, %v879
        %v884 = vadd.f32 %v808, %v880
        %885 = vrot.lane.b32.xlu0 %v692, 127
        %v886 = vpop.permute.xlu0 %885
        %887 = vrot.lane.b32.xlu0 %v693, 127
        %v888 = vpop.permute.xlu0 %887
        %889 = vrot.lane.b32.xlu0 %v694, 127
        %v890 = vpop.permute.xlu0 %889
        %891 = vrot.lane.b32.xlu0 %v695, 127
        %v892 = vpop.permute.xlu0 %891
        %s893 = scalar_lea.vmem %s3, 320
        %v894 = vld [vmem:[%s893] sm:$0xff]
        %v895 = vld [vmem:[%s893 + $0x8] sm:$0xff]
        %v896 = vld [vmem:[%s893 + $0x10] sm:$0xff]
        %v897 = vld [vmem:[%s893 + $0x18] sm:$0xff]
        %v898 = vmul.f32 %v894, %v886
        %v899 = vmul.f32 %v895, %v888
        %v900 = vmul.f32 %v896, %v890
        %v901 = vmul.f32 %v897, %v892
        %v902 = vadd.f32 %v826, %v898
        %v903 = vadd.f32 %v827, %v899
        %v904 = vadd.f32 %v828, %v900
        %v905 = vadd.f32 %v829, %v901
        %906 = vrot.lane.b32.xlu0 %v692, 126
        %v907 = vpop.permute.xlu0 %906
        %908 = vrot.lane.b32.xlu0 %v693, 126
        %v909 = vpop.permute.xlu0 %908
        %910 = vrot.lane.b32.xlu0 %v694, 126
        %v911 = vpop.permute.xlu0 %910
        %912 = vrot.lane.b32.xlu0 %v695, 126
        %v913 = vpop.permute.xlu0 %912
        %s914 = scalar_lea.vmem %s3, 352
        %v915 = vld [vmem:[%s914] sm:$0xff]
        %v916 = vld [vmem:[%s914 + $0x8] sm:$0xff]
        %v917 = vld [vmem:[%s914 + $0x10] sm:$0xff]
        %v918 = vld [vmem:[%s914 + $0x18] sm:$0xff]
        %v919 = vmul.f32 %v915, %v907
        %v920 = vmul.f32 %v916, %v909
        %v921 = vmul.f32 %v917, %v911
        %v922 = vmul.f32 %v918, %v913
        %v923 = vadd.f32 %v847, %v919
        %v924 = vadd.f32 %v848, %v920
        %v925 = vadd.f32 %v849, %v921
        %v926 = vadd.f32 %v850, %v922
        %927 = vrot.lane.b32.xlu0 %v692, 125
        %v928 = vpop.permute.xlu0 %927
        %929 = vrot.lane.b32.xlu0 %v693, 125
        %v930 = vpop.permute.xlu0 %929
        %931 = vrot.lane.b32.xlu0 %v694, 125
        %v932 = vpop.permute.xlu0 %931
        %933 = vrot.lane.b32.xlu0 %v695, 125
        %v934 = vpop.permute.xlu0 %933
        %s935 = scalar_lea.vmem %s3, 384
        %v936 = vld [vmem:[%s935] sm:$0xff]
        %v937 = vld [vmem:[%s935 + $0x8] sm:$0xff]
        %v938 = vld [vmem:[%s935 + $0x10] sm:$0xff]
        %v939 = vld [vmem:[%s935 + $0x18] sm:$0xff]
        %v940 = vmul.f32 %v936, %v928
        %v941 = vmul.f32 %v937, %v930
        %v942 = vmul.f32 %v938, %v932
        %v943 = vmul.f32 %v939, %v934
        %v944 = vadd.f32 %v868, %v940
        %v945 = vadd.f32 %v869, %v941
        %v946 = vadd.f32 %v870, %v942
        %v947 = vadd.f32 %v871, %v943
        %948 = vrot.lane.b32.xlu0 %v692, 124
        %v949 = vpop.permute.xlu0 %948
        %950 = vrot.lane.b32.xlu0 %v693, 124
        %v951 = vpop.permute.xlu0 %950
        %952 = vrot.lane.b32.xlu0 %v694, 124
        %v953 = vpop.permute.xlu0 %952
        %954 = vrot.lane.b32.xlu0 %v695, 124
        %v955 = vpop.permute.xlu0 %954
        %s956 = scalar_lea.vmem %s3, 416
        %v957 = vld [vmem:[%s956] sm:$0xff]
        %v958 = vld [vmem:[%s956 + $0x8] sm:$0xff]
        %v959 = vld [vmem:[%s956 + $0x10] sm:$0xff]
        %v960 = vld [vmem:[%s956 + $0x18] sm:$0xff]
        %v961 = vmul.f32 %v957, %v949
        %v962 = vmul.f32 %v958, %v951
        %v963 = vmul.f32 %v959, %v953
        %v964 = vmul.f32 %v960, %v955
        %v965 = vadd.f32 %v881, %v961
        %v966 = vadd.f32 %v882, %v962
        %v967 = vadd.f32 %v883, %v963
        %v968 = vadd.f32 %v884, %v964
        %969 = vrot.lane.b32.xlu0 %v692, 123
        %v970 = vpop.permute.xlu0 %969
        %971 = vrot.lane.b32.xlu0 %v693, 123
        %v972 = vpop.permute.xlu0 %971
        %973 = vrot.lane.b32.xlu0 %v694, 123
        %v974 = vpop.permute.xlu0 %973
        %975 = vrot.lane.b32.xlu0 %v695, 123
        %v976 = vpop.permute.xlu0 %975
        %s977 = scalar_lea.vmem %s3, 448
        %v978 = vld [vmem:[%s977] sm:$0xff]
        %v979 = vld [vmem:[%s977 + $0x8] sm:$0xff]
        %v980 = vld [vmem:[%s977 + $0x10] sm:$0xff]
        %v981 = vld [vmem:[%s977 + $0x18] sm:$0xff]
        %v982 = vmul.f32 %v978, %v970
        %v983 = vmul.f32 %v979, %v972
        %v984 = vmul.f32 %v980, %v974
        %v985 = vmul.f32 %v981, %v976
        %v986 = vadd.f32 %v902, %v982
        %v987 = vadd.f32 %v903, %v983
        %v988 = vadd.f32 %v904, %v984
        %v989 = vadd.f32 %v905, %v985
        %990 = vrot.lane.b32.xlu0 %v692, 122
        %v991 = vpop.permute.xlu0 %990
        %992 = vrot.lane.b32.xlu0 %v693, 122
        %v993 = vpop.permute.xlu0 %992
        %994 = vrot.lane.b32.xlu0 %v694, 122
        %v995 = vpop.permute.xlu0 %994
        %996 = vrot.lane.b32.xlu0 %v695, 122
        %v997 = vpop.permute.xlu0 %996
        %s998 = scalar_lea.vmem %s3, 480
        %v999 = vld [vmem:[%s998] sm:$0xff]
        %v1000 = vld [vmem:[%s998 + $0x8] sm:$0xff]
        %v1001 = vld [vmem:[%s998 + $0x10] sm:$0xff]
        %v1002 = vld [vmem:[%s998 + $0x18] sm:$0xff]
        %v1003 = vmul.f32 %v999, %v991
        %v1004 = vmul.f32 %v1000, %v993
        %v1005 = vmul.f32 %v1001, %v995
        %v1006 = vmul.f32 %v1002, %v997
        %v1007 = vadd.f32 %v923, %v1003
        %v1008 = vadd.f32 %v924, %v1004
        %v1009 = vadd.f32 %v925, %v1005
        %v1010 = vadd.f32 %v926, %v1006
        %1011 = vrot.lane.b32.xlu0 %v692, 121
        %v1012 = vpop.permute.xlu0 %1011
        %1013 = vrot.lane.b32.xlu0 %v693, 121
        %v1014 = vpop.permute.xlu0 %1013
        %1015 = vrot.lane.b32.xlu0 %v694, 121
        %v1016 = vpop.permute.xlu0 %1015
        %1017 = vrot.lane.b32.xlu0 %v695, 121
        %v1018 = vpop.permute.xlu0 %1017
        %s1019 = scalar_lea.vmem %s3, 512
        %v1020 = vld [vmem:[%s1019] sm:$0xff]
        %v1021 = vld [vmem:[%s1019 + $0x8] sm:$0xff]
        %v1022 = vld [vmem:[%s1019 + $0x10] sm:$0xff]
        %v1023 = vld [vmem:[%s1019 + $0x18] sm:$0xff]
        %v1024 = vmul.f32 %v1020, %v1012
        %v1025 = vmul.f32 %v1021, %v1014
        %v1026 = vmul.f32 %v1022, %v1016
        %v1027 = vmul.f32 %v1023, %v1018
        %v1028 = vadd.f32 %v944, %v1024
        %v1029 = vadd.f32 %v945, %v1025
        %v1030 = vadd.f32 %v946, %v1026
        %v1031 = vadd.f32 %v947, %v1027
        %1032 = vrot.lane.b32.xlu0 %v692, 120
        %v1033 = vpop.permute.xlu0 %1032
        %1034 = vrot.lane.b32.xlu0 %v693, 120
        %v1035 = vpop.permute.xlu0 %1034
        %1036 = vrot.lane.b32.xlu0 %v694, 120
        %v1037 = vpop.permute.xlu0 %1036
        %1038 = vrot.lane.b32.xlu0 %v695, 120
        %v1039 = vpop.permute.xlu0 %1038
        %s1040 = scalar_lea.vmem %s3, 544
        %v1041 = vld [vmem:[%s1040] sm:$0xff]
        %v1042 = vld [vmem:[%s1040 + $0x8] sm:$0xff]
        %v1043 = vld [vmem:[%s1040 + $0x10] sm:$0xff]
        %v1044 = vld [vmem:[%s1040 + $0x18] sm:$0xff]
        %v1045 = vmul.f32 %v1041, %v1033
        %v1046 = vmul.f32 %v1042, %v1035
        %v1047 = vmul.f32 %v1043, %v1037
        %v1048 = vmul.f32 %v1044, %v1039
        %v1049 = vadd.f32 %v965, %v1045
        %v1050 = vadd.f32 %v966, %v1046
        %v1051 = vadd.f32 %v967, %v1047
        %v1052 = vadd.f32 %v968, %v1048
        %1053 = vrot.lane.b32.xlu0 %v692, 119
        %v1054 = vpop.permute.xlu0 %1053
        %1055 = vrot.lane.b32.xlu0 %v693, 119
        %v1056 = vpop.permute.xlu0 %1055
        %1057 = vrot.lane.b32.xlu0 %v694, 119
        %v1058 = vpop.permute.xlu0 %1057
        %1059 = vrot.lane.b32.xlu0 %v695, 119
        %v1060 = vpop.permute.xlu0 %1059
        %s1061 = scalar_lea.vmem %s3, 576
        %v1062 = vld [vmem:[%s1061] sm:$0xff]
        %v1063 = vld [vmem:[%s1061 + $0x8] sm:$0xff]
        %v1064 = vld [vmem:[%s1061 + $0x10] sm:$0xff]
        %v1065 = vld [vmem:[%s1061 + $0x18] sm:$0xff]
        %v1066 = vmul.f32 %v1062, %v1054
        %v1067 = vmul.f32 %v1063, %v1056
        %v1068 = vmul.f32 %v1064, %v1058
        %v1069 = vmul.f32 %v1065, %v1060
        %v1070 = vadd.f32 %v986, %v1066
        %v1071 = vadd.f32 %v987, %v1067
        %v1072 = vadd.f32 %v988, %v1068
        %v1073 = vadd.f32 %v989, %v1069
        %v1074 = vadd.f32 %v1028, %v1049
        %v1075 = vadd.f32 %v1029, %v1050
        %v1076 = vadd.f32 %v1030, %v1051
        %v1077 = vadd.f32 %v1031, %v1052
        %v1078 = vadd.f32 %v1070, %v1007
        %v1079 = vadd.f32 %v1071, %v1008
        %v1080 = vadd.f32 %v1072, %v1009
        %v1081 = vadd.f32 %v1073, %v1010
        %v1082 = vadd.f32 %v1074, %v1078
        %v1083 = vadd.f32 %v1075, %v1079
        %v1084 = vadd.f32 %v1076, %v1080
        %v1085 = vadd.f32 %v1077, %v1081
        %v1086 = vadd.f32 %v1082, %v696
        %v1087 = vadd.f32 %v1083, %v697
        %v1088 = vadd.f32 %v1084, %v698
        %v1089 = vadd.f32 %v1085, %v699
        %v1090 = vsel %vm297, %v1086, 0.0
        %v1091 = vsel %vm297, %v1087, 0.0
        %v1092 = vsel %vm297, %v1088, 0.0
        %v1093 = vsel %vm297, %v1089, 0.0
        %v1094 = vld [vmem:[%s6] sm:$0xff]
        %v1095 = vld [vmem:[%s6 + $0x8] sm:$0xff]
        %v1096 = vld [vmem:[%s6 + $0x10] sm:$0xff]
        %v1097 = vld [vmem:[%s6 + $0x18] sm:$0xff]
        %1098 = vrot.lane.b32.xlu0 %v1090, 14
        %v1099 = vpop.permute.xlu0 %1098
        %1100 = vrot.lane.b32.xlu0 %v1091, 14
        %v1101 = vpop.permute.xlu0 %1100
        %1102 = vrot.lane.b32.xlu0 %v1092, 14
        %v1103 = vpop.permute.xlu0 %1102
        %1104 = vrot.lane.b32.xlu0 %v1093, 14
        %v1105 = vpop.permute.xlu0 %1104
        %v1106 = vld [vmem:[%s5] sm:$0xff]
        %v1107 = vld [vmem:[%s5 + $0x8] sm:$0xff]
        %v1108 = vld [vmem:[%s5 + $0x10] sm:$0xff]
        %v1109 = vld [vmem:[%s5 + $0x18] sm:$0xff]
        %v1110 = vmul.f32 %v1106, %v1099
        %v1111 = vmul.f32 %v1107, %v1101
        %v1112 = vmul.f32 %v1108, %v1103
        %v1113 = vmul.f32 %v1109, %v1105
        %1114 = vrot.lane.b32.xlu0 %v1090, 13
        %v1115 = vpop.permute.xlu0 %1114
        %1116 = vrot.lane.b32.xlu0 %v1091, 13
        %v1117 = vpop.permute.xlu0 %1116
        %1118 = vrot.lane.b32.xlu0 %v1092, 13
        %v1119 = vpop.permute.xlu0 %1118
        %1120 = vrot.lane.b32.xlu0 %v1093, 13
        %v1121 = vpop.permute.xlu0 %1120
        %s1122 = scalar_lea.vmem %s5, 32
        %v1123 = vld [vmem:[%s1122] sm:$0xff]
        %v1124 = vld [vmem:[%s1122 + $0x8] sm:$0xff]
        %v1125 = vld [vmem:[%s1122 + $0x10] sm:$0xff]
        %v1126 = vld [vmem:[%s1122 + $0x18] sm:$0xff]
        %v1127 = vmul.f32 %v1123, %v1115
        %v1128 = vmul.f32 %v1124, %v1117
        %v1129 = vmul.f32 %v1125, %v1119
        %v1130 = vmul.f32 %v1126, %v1121
        %1131 = vrot.lane.b32.xlu0 %v1090, 12
        %v1132 = vpop.permute.xlu0 %1131
        %1133 = vrot.lane.b32.xlu0 %v1091, 12
        %v1134 = vpop.permute.xlu0 %1133
        %1135 = vrot.lane.b32.xlu0 %v1092, 12
        %v1136 = vpop.permute.xlu0 %1135
        %1137 = vrot.lane.b32.xlu0 %v1093, 12
        %v1138 = vpop.permute.xlu0 %1137
        %s1139 = scalar_lea.vmem %s5, 64
        %v1140 = vld [vmem:[%s1139] sm:$0xff]
        %v1141 = vld [vmem:[%s1139 + $0x8] sm:$0xff]
        %v1142 = vld [vmem:[%s1139 + $0x10] sm:$0xff]
        %v1143 = vld [vmem:[%s1139 + $0x18] sm:$0xff]
        %v1144 = vmul.f32 %v1140, %v1132
        %v1145 = vmul.f32 %v1141, %v1134
        %v1146 = vmul.f32 %v1142, %v1136
        %v1147 = vmul.f32 %v1143, %v1138
        %1148 = vrot.lane.b32.xlu0 %v1090, 11
        %v1149 = vpop.permute.xlu0 %1148
        %1150 = vrot.lane.b32.xlu0 %v1091, 11
        %v1151 = vpop.permute.xlu0 %1150
        %1152 = vrot.lane.b32.xlu0 %v1092, 11
        %v1153 = vpop.permute.xlu0 %1152
        %1154 = vrot.lane.b32.xlu0 %v1093, 11
        %v1155 = vpop.permute.xlu0 %1154
        %s1156 = scalar_lea.vmem %s5, 96
        %v1157 = vld [vmem:[%s1156] sm:$0xff]
        %v1158 = vld [vmem:[%s1156 + $0x8] sm:$0xff]
        %v1159 = vld [vmem:[%s1156 + $0x10] sm:$0xff]
        %v1160 = vld [vmem:[%s1156 + $0x18] sm:$0xff]
        %v1161 = vmul.f32 %v1157, %v1149
        %v1162 = vmul.f32 %v1158, %v1151
        %v1163 = vmul.f32 %v1159, %v1153
        %v1164 = vmul.f32 %v1160, %v1155
        %1165 = vrot.lane.b32.xlu0 %v1090, 10
        %v1166 = vpop.permute.xlu0 %1165
        %1167 = vrot.lane.b32.xlu0 %v1091, 10
        %v1168 = vpop.permute.xlu0 %1167
        %1169 = vrot.lane.b32.xlu0 %v1092, 10
        %v1170 = vpop.permute.xlu0 %1169
        %1171 = vrot.lane.b32.xlu0 %v1093, 10
        %v1172 = vpop.permute.xlu0 %1171
        %s1173 = scalar_lea.vmem %s5, 128
        %v1174 = vld [vmem:[%s1173] sm:$0xff]
        %v1175 = vld [vmem:[%s1173 + $0x8] sm:$0xff]
        %v1176 = vld [vmem:[%s1173 + $0x10] sm:$0xff]
        %v1177 = vld [vmem:[%s1173 + $0x18] sm:$0xff]
        %v1178 = vmul.f32 %v1174, %v1166
        %v1179 = vmul.f32 %v1175, %v1168
        %v1180 = vmul.f32 %v1176, %v1170
        %v1181 = vmul.f32 %v1177, %v1172
        %v1182 = vadd.f32 %v1110, %v1178
        %v1183 = vadd.f32 %v1111, %v1179
        %v1184 = vadd.f32 %v1112, %v1180
        %v1185 = vadd.f32 %v1113, %v1181
        %1186 = vrot.lane.b32.xlu0 %v1090, 9
        %v1187 = vpop.permute.xlu0 %1186
        %1188 = vrot.lane.b32.xlu0 %v1091, 9
        %v1189 = vpop.permute.xlu0 %1188
        %1190 = vrot.lane.b32.xlu0 %v1092, 9
        %v1191 = vpop.permute.xlu0 %1190
        %1192 = vrot.lane.b32.xlu0 %v1093, 9
        %v1193 = vpop.permute.xlu0 %1192
        %s1194 = scalar_lea.vmem %s5, 160
        %v1195 = vld [vmem:[%s1194] sm:$0xff]
        %v1196 = vld [vmem:[%s1194 + $0x8] sm:$0xff]
        %v1197 = vld [vmem:[%s1194 + $0x10] sm:$0xff]
        %v1198 = vld [vmem:[%s1194 + $0x18] sm:$0xff]
        %v1199 = vmul.f32 %v1195, %v1187
        %v1200 = vmul.f32 %v1196, %v1189
        %v1201 = vmul.f32 %v1197, %v1191
        %v1202 = vmul.f32 %v1198, %v1193
        %v1203 = vadd.f32 %v1127, %v1199
        %v1204 = vadd.f32 %v1128, %v1200
        %v1205 = vadd.f32 %v1129, %v1201
        %v1206 = vadd.f32 %v1130, %v1202
        %1207 = vrot.lane.b32.xlu0 %v1090, 8
        %v1208 = vpop.permute.xlu0 %1207
        %1209 = vrot.lane.b32.xlu0 %v1091, 8
        %v1210 = vpop.permute.xlu0 %1209
        %1211 = vrot.lane.b32.xlu0 %v1092, 8
        %v1212 = vpop.permute.xlu0 %1211
        %1213 = vrot.lane.b32.xlu0 %v1093, 8
        %v1214 = vpop.permute.xlu0 %1213
        %s1215 = scalar_lea.vmem %s5, 192
        %v1216 = vld [vmem:[%s1215] sm:$0xff]
        %v1217 = vld [vmem:[%s1215 + $0x8] sm:$0xff]
        %v1218 = vld [vmem:[%s1215 + $0x10] sm:$0xff]
        %v1219 = vld [vmem:[%s1215 + $0x18] sm:$0xff]
        %v1220 = vmul.f32 %v1216, %v1208
        %v1221 = vmul.f32 %v1217, %v1210
        %v1222 = vmul.f32 %v1218, %v1212
        %v1223 = vmul.f32 %v1219, %v1214
        %v1224 = vadd.f32 %v1144, %v1220
        %v1225 = vadd.f32 %v1145, %v1221
        %v1226 = vadd.f32 %v1146, %v1222
        %v1227 = vadd.f32 %v1147, %v1223
        %1228 = vrot.lane.b32.xlu0 %v1090, 7
        %v1229 = vpop.permute.xlu0 %1228
        %1230 = vrot.lane.b32.xlu0 %v1091, 7
        %v1231 = vpop.permute.xlu0 %1230
        %1232 = vrot.lane.b32.xlu0 %v1092, 7
        %v1233 = vpop.permute.xlu0 %1232
        %1234 = vrot.lane.b32.xlu0 %v1093, 7
        %v1235 = vpop.permute.xlu0 %1234
        %s1236 = scalar_lea.vmem %s5, 224
        %v1237 = vld [vmem:[%s1236] sm:$0xff]
        %v1238 = vld [vmem:[%s1236 + $0x8] sm:$0xff]
        %v1239 = vld [vmem:[%s1236 + $0x10] sm:$0xff]
        %v1240 = vld [vmem:[%s1236 + $0x18] sm:$0xff]
        %v1241 = vmul.f32 %v1237, %v1229
        %v1242 = vmul.f32 %v1238, %v1231
        %v1243 = vmul.f32 %v1239, %v1233
        %v1244 = vmul.f32 %v1240, %v1235
        %v1245 = vadd.f32 %v1161, %v1241
        %v1246 = vadd.f32 %v1162, %v1242
        %v1247 = vadd.f32 %v1163, %v1243
        %v1248 = vadd.f32 %v1164, %v1244
        %1249 = vrot.lane.b32.xlu0 %v1090, 6
        %v1250 = vpop.permute.xlu0 %1249
        %1251 = vrot.lane.b32.xlu0 %v1091, 6
        %v1252 = vpop.permute.xlu0 %1251
        %1253 = vrot.lane.b32.xlu0 %v1092, 6
        %v1254 = vpop.permute.xlu0 %1253
        %1255 = vrot.lane.b32.xlu0 %v1093, 6
        %v1256 = vpop.permute.xlu0 %1255
        %s1257 = scalar_lea.vmem %s5, 256
        %v1258 = vld [vmem:[%s1257] sm:$0xff]
        %v1259 = vld [vmem:[%s1257 + $0x8] sm:$0xff]
        %v1260 = vld [vmem:[%s1257 + $0x10] sm:$0xff]
        %v1261 = vld [vmem:[%s1257 + $0x18] sm:$0xff]
        %v1262 = vmul.f32 %v1258, %v1250
        %v1263 = vmul.f32 %v1259, %v1252
        %v1264 = vmul.f32 %v1260, %v1254
        %v1265 = vmul.f32 %v1261, %v1256
        %v1266 = vadd.f32 %v1182, %v1262
        %v1267 = vadd.f32 %v1183, %v1263
        %v1268 = vadd.f32 %v1184, %v1264
        %v1269 = vadd.f32 %v1185, %v1265
        %1270 = vrot.lane.b32.xlu0 %v1090, 5
        %v1271 = vpop.permute.xlu0 %1270
        %1272 = vrot.lane.b32.xlu0 %v1091, 5
        %v1273 = vpop.permute.xlu0 %1272
        %1274 = vrot.lane.b32.xlu0 %v1092, 5
        %v1275 = vpop.permute.xlu0 %1274
        %1276 = vrot.lane.b32.xlu0 %v1093, 5
        %v1277 = vpop.permute.xlu0 %1276
        %s1278 = scalar_lea.vmem %s5, 288
        %v1279 = vld [vmem:[%s1278] sm:$0xff]
        %v1280 = vld [vmem:[%s1278 + $0x8] sm:$0xff]
        %v1281 = vld [vmem:[%s1278 + $0x10] sm:$0xff]
        %v1282 = vld [vmem:[%s1278 + $0x18] sm:$0xff]
        %v1283 = vmul.f32 %v1279, %v1271
        %v1284 = vmul.f32 %v1280, %v1273
        %v1285 = vmul.f32 %v1281, %v1275
        %v1286 = vmul.f32 %v1282, %v1277
        %v1287 = vadd.f32 %v1203, %v1283
        %v1288 = vadd.f32 %v1204, %v1284
        %v1289 = vadd.f32 %v1205, %v1285
        %v1290 = vadd.f32 %v1206, %v1286
        %1291 = vrot.lane.b32.xlu0 %v1090, 4
        %v1292 = vpop.permute.xlu0 %1291
        %1293 = vrot.lane.b32.xlu0 %v1091, 4
        %v1294 = vpop.permute.xlu0 %1293
        %1295 = vrot.lane.b32.xlu0 %v1092, 4
        %v1296 = vpop.permute.xlu0 %1295
        %1297 = vrot.lane.b32.xlu0 %v1093, 4
        %v1298 = vpop.permute.xlu0 %1297
        %s1299 = scalar_lea.vmem %s5, 320
        %v1300 = vld [vmem:[%s1299] sm:$0xff]
        %v1301 = vld [vmem:[%s1299 + $0x8] sm:$0xff]
        %v1302 = vld [vmem:[%s1299 + $0x10] sm:$0xff]
        %v1303 = vld [vmem:[%s1299 + $0x18] sm:$0xff]
        %v1304 = vmul.f32 %v1300, %v1292
        %v1305 = vmul.f32 %v1301, %v1294
        %v1306 = vmul.f32 %v1302, %v1296
        %v1307 = vmul.f32 %v1303, %v1298
        %v1308 = vadd.f32 %v1224, %v1304
        %v1309 = vadd.f32 %v1225, %v1305
        %v1310 = vadd.f32 %v1226, %v1306
        %v1311 = vadd.f32 %v1227, %v1307
        %1312 = vrot.lane.b32.xlu0 %v1090, 3
        %v1313 = vpop.permute.xlu0 %1312
        %1314 = vrot.lane.b32.xlu0 %v1091, 3
        %v1315 = vpop.permute.xlu0 %1314
        %1316 = vrot.lane.b32.xlu0 %v1092, 3
        %v1317 = vpop.permute.xlu0 %1316
        %1318 = vrot.lane.b32.xlu0 %v1093, 3
        %v1319 = vpop.permute.xlu0 %1318
        %s1320 = scalar_lea.vmem %s5, 352
        %v1321 = vld [vmem:[%s1320] sm:$0xff]
        %v1322 = vld [vmem:[%s1320 + $0x8] sm:$0xff]
        %v1323 = vld [vmem:[%s1320 + $0x10] sm:$0xff]
        %v1324 = vld [vmem:[%s1320 + $0x18] sm:$0xff]
        %v1325 = vmul.f32 %v1321, %v1313
        %v1326 = vmul.f32 %v1322, %v1315
        %v1327 = vmul.f32 %v1323, %v1317
        %v1328 = vmul.f32 %v1324, %v1319
        %v1329 = vadd.f32 %v1245, %v1325
        %v1330 = vadd.f32 %v1246, %v1326
        %v1331 = vadd.f32 %v1247, %v1327
        %v1332 = vadd.f32 %v1248, %v1328
        %1333 = vrot.lane.b32.xlu0 %v1090, 2
        %v1334 = vpop.permute.xlu0 %1333
        %1335 = vrot.lane.b32.xlu0 %v1091, 2
        %v1336 = vpop.permute.xlu0 %1335
        %1337 = vrot.lane.b32.xlu0 %v1092, 2
        %v1338 = vpop.permute.xlu0 %1337
        %1339 = vrot.lane.b32.xlu0 %v1093, 2
        %v1340 = vpop.permute.xlu0 %1339
        %s1341 = scalar_lea.vmem %s5, 384
        %v1342 = vld [vmem:[%s1341] sm:$0xff]
        %v1343 = vld [vmem:[%s1341 + $0x8] sm:$0xff]
        %v1344 = vld [vmem:[%s1341 + $0x10] sm:$0xff]
        %v1345 = vld [vmem:[%s1341 + $0x18] sm:$0xff]
        %v1346 = vmul.f32 %v1342, %v1334
        %v1347 = vmul.f32 %v1343, %v1336
        %v1348 = vmul.f32 %v1344, %v1338
        %v1349 = vmul.f32 %v1345, %v1340
        %v1350 = vadd.f32 %v1266, %v1346
        %v1351 = vadd.f32 %v1267, %v1347
        %v1352 = vadd.f32 %v1268, %v1348
        %v1353 = vadd.f32 %v1269, %v1349
        %1354 = vrot.lane.b32.xlu0 %v1090, 1
        %v1355 = vpop.permute.xlu0 %1354
        %1356 = vrot.lane.b32.xlu0 %v1091, 1
        %v1357 = vpop.permute.xlu0 %1356
        %1358 = vrot.lane.b32.xlu0 %v1092, 1
        %v1359 = vpop.permute.xlu0 %1358
        %1360 = vrot.lane.b32.xlu0 %v1093, 1
        %v1361 = vpop.permute.xlu0 %1360
        %s1362 = scalar_lea.vmem %s5, 416
        %v1363 = vld [vmem:[%s1362] sm:$0xff]
        %v1364 = vld [vmem:[%s1362 + $0x8] sm:$0xff]
        %v1365 = vld [vmem:[%s1362 + $0x10] sm:$0xff]
        %v1366 = vld [vmem:[%s1362 + $0x18] sm:$0xff]
        %v1367 = vmul.f32 %v1363, %v1355
        %v1368 = vmul.f32 %v1364, %v1357
        %v1369 = vmul.f32 %v1365, %v1359
        %v1370 = vmul.f32 %v1366, %v1361
        %v1371 = vadd.f32 %v1287, %v1367
        %v1372 = vadd.f32 %v1288, %v1368
        %v1373 = vadd.f32 %v1289, %v1369
        %v1374 = vadd.f32 %v1290, %v1370
        %s1375 = scalar_lea.vmem %s5, 448
        %v1376 = vld [vmem:[%s1375] sm:$0xff]
        %v1377 = vld [vmem:[%s1375 + $0x8] sm:$0xff]
        %v1378 = vld [vmem:[%s1375 + $0x10] sm:$0xff]
        %v1379 = vld [vmem:[%s1375 + $0x18] sm:$0xff]
        %v1380 = vmul.f32 %v1376, %v1090
        %v1381 = vmul.f32 %v1377, %v1091
        %v1382 = vmul.f32 %v1378, %v1092
        %v1383 = vmul.f32 %v1379, %v1093
        %v1384 = vadd.f32 %v1308, %v1380
        %v1385 = vadd.f32 %v1309, %v1381
        %v1386 = vadd.f32 %v1310, %v1382
        %v1387 = vadd.f32 %v1311, %v1383
        %1388 = vrot.lane.b32.xlu0 %v1090, 127
        %v1389 = vpop.permute.xlu0 %1388
        %1390 = vrot.lane.b32.xlu0 %v1091, 127
        %v1391 = vpop.permute.xlu0 %1390
        %1392 = vrot.lane.b32.xlu0 %v1092, 127
        %v1393 = vpop.permute.xlu0 %1392
        %1394 = vrot.lane.b32.xlu0 %v1093, 127
        %v1395 = vpop.permute.xlu0 %1394
        %s1396 = scalar_lea.vmem %s5, 480
        %v1397 = vld [vmem:[%s1396] sm:$0xff]
        %v1398 = vld [vmem:[%s1396 + $0x8] sm:$0xff]
        %v1399 = vld [vmem:[%s1396 + $0x10] sm:$0xff]
        %v1400 = vld [vmem:[%s1396 + $0x18] sm:$0xff]
        %v1401 = vmul.f32 %v1397, %v1389
        %v1402 = vmul.f32 %v1398, %v1391
        %v1403 = vmul.f32 %v1399, %v1393
        %v1404 = vmul.f32 %v1400, %v1395
        %v1405 = vadd.f32 %v1329, %v1401
        %v1406 = vadd.f32 %v1330, %v1402
        %v1407 = vadd.f32 %v1331, %v1403
        %v1408 = vadd.f32 %v1332, %v1404
        %1409 = vrot.lane.b32.xlu0 %v1090, 126
        %v1410 = vpop.permute.xlu0 %1409
        %1411 = vrot.lane.b32.xlu0 %v1091, 126
        %v1412 = vpop.permute.xlu0 %1411
        %1413 = vrot.lane.b32.xlu0 %v1092, 126
        %v1414 = vpop.permute.xlu0 %1413
        %1415 = vrot.lane.b32.xlu0 %v1093, 126
        %v1416 = vpop.permute.xlu0 %1415
        %s1417 = scalar_lea.vmem %s5, 512
        %v1418 = vld [vmem:[%s1417] sm:$0xff]
        %v1419 = vld [vmem:[%s1417 + $0x8] sm:$0xff]
        %v1420 = vld [vmem:[%s1417 + $0x10] sm:$0xff]
        %v1421 = vld [vmem:[%s1417 + $0x18] sm:$0xff]
        %v1422 = vmul.f32 %v1418, %v1410
        %v1423 = vmul.f32 %v1419, %v1412
        %v1424 = vmul.f32 %v1420, %v1414
        %v1425 = vmul.f32 %v1421, %v1416
        %v1426 = vadd.f32 %v1350, %v1422
        %v1427 = vadd.f32 %v1351, %v1423
        %v1428 = vadd.f32 %v1352, %v1424
        %v1429 = vadd.f32 %v1353, %v1425
        %1430 = vrot.lane.b32.xlu0 %v1090, 125
        %v1431 = vpop.permute.xlu0 %1430
        %1432 = vrot.lane.b32.xlu0 %v1091, 125
        %v1433 = vpop.permute.xlu0 %1432
        %1434 = vrot.lane.b32.xlu0 %v1092, 125
        %v1435 = vpop.permute.xlu0 %1434
        %1436 = vrot.lane.b32.xlu0 %v1093, 125
        %v1437 = vpop.permute.xlu0 %1436
        %s1438 = scalar_lea.vmem %s5, 544
        %v1439 = vld [vmem:[%s1438] sm:$0xff]
        %v1440 = vld [vmem:[%s1438 + $0x8] sm:$0xff]
        %v1441 = vld [vmem:[%s1438 + $0x10] sm:$0xff]
        %v1442 = vld [vmem:[%s1438 + $0x18] sm:$0xff]
        %v1443 = vmul.f32 %v1439, %v1431
        %v1444 = vmul.f32 %v1440, %v1433
        %v1445 = vmul.f32 %v1441, %v1435
        %v1446 = vmul.f32 %v1442, %v1437
        %v1447 = vadd.f32 %v1371, %v1443
        %v1448 = vadd.f32 %v1372, %v1444
        %v1449 = vadd.f32 %v1373, %v1445
        %v1450 = vadd.f32 %v1374, %v1446
        %1451 = vrot.lane.b32.xlu0 %v1090, 124
        %v1452 = vpop.permute.xlu0 %1451
        %1453 = vrot.lane.b32.xlu0 %v1091, 124
        %v1454 = vpop.permute.xlu0 %1453
        %1455 = vrot.lane.b32.xlu0 %v1092, 124
        %v1456 = vpop.permute.xlu0 %1455
        %1457 = vrot.lane.b32.xlu0 %v1093, 124
        %v1458 = vpop.permute.xlu0 %1457
        %s1459 = scalar_lea.vmem %s5, 576
        %v1460 = vld [vmem:[%s1459] sm:$0xff]
        %v1461 = vld [vmem:[%s1459 + $0x8] sm:$0xff]
        %v1462 = vld [vmem:[%s1459 + $0x10] sm:$0xff]
        %v1463 = vld [vmem:[%s1459 + $0x18] sm:$0xff]
        %v1464 = vmul.f32 %v1460, %v1452
        %v1465 = vmul.f32 %v1461, %v1454
        %v1466 = vmul.f32 %v1462, %v1456
        %v1467 = vmul.f32 %v1463, %v1458
        %v1468 = vadd.f32 %v1384, %v1464
        %v1469 = vadd.f32 %v1385, %v1465
        %v1470 = vadd.f32 %v1386, %v1466
        %v1471 = vadd.f32 %v1387, %v1467
        %1472 = vrot.lane.b32.xlu0 %v1090, 123
        %v1473 = vpop.permute.xlu0 %1472
        %1474 = vrot.lane.b32.xlu0 %v1091, 123
        %v1475 = vpop.permute.xlu0 %1474
        %1476 = vrot.lane.b32.xlu0 %v1092, 123
        %v1477 = vpop.permute.xlu0 %1476
        %1478 = vrot.lane.b32.xlu0 %v1093, 123
        %v1479 = vpop.permute.xlu0 %1478
        %s1480 = scalar_lea.vmem %s5, 608
        %v1481 = vld [vmem:[%s1480] sm:$0xff]
        %v1482 = vld [vmem:[%s1480 + $0x8] sm:$0xff]
        %v1483 = vld [vmem:[%s1480 + $0x10] sm:$0xff]
        %v1484 = vld [vmem:[%s1480 + $0x18] sm:$0xff]
        %v1485 = vmul.f32 %v1481, %v1473
        %v1486 = vmul.f32 %v1482, %v1475
        %v1487 = vmul.f32 %v1483, %v1477
        %v1488 = vmul.f32 %v1484, %v1479
        %v1489 = vadd.f32 %v1405, %v1485
        %v1490 = vadd.f32 %v1406, %v1486
        %v1491 = vadd.f32 %v1407, %v1487
        %v1492 = vadd.f32 %v1408, %v1488
        %1493 = vrot.lane.b32.xlu0 %v1090, 122
        %v1494 = vpop.permute.xlu0 %1493
        %1495 = vrot.lane.b32.xlu0 %v1091, 122
        %v1496 = vpop.permute.xlu0 %1495
        %1497 = vrot.lane.b32.xlu0 %v1092, 122
        %v1498 = vpop.permute.xlu0 %1497
        %1499 = vrot.lane.b32.xlu0 %v1093, 122
        %v1500 = vpop.permute.xlu0 %1499
        %s1501 = scalar_lea.vmem %s5, 640
        %v1502 = vld [vmem:[%s1501] sm:$0xff]
        %v1503 = vld [vmem:[%s1501 + $0x8] sm:$0xff]
        %v1504 = vld [vmem:[%s1501 + $0x10] sm:$0xff]
        %v1505 = vld [vmem:[%s1501 + $0x18] sm:$0xff]
        %v1506 = vmul.f32 %v1502, %v1494
        %v1507 = vmul.f32 %v1503, %v1496
        %v1508 = vmul.f32 %v1504, %v1498
        %v1509 = vmul.f32 %v1505, %v1500
        %v1510 = vadd.f32 %v1426, %v1506
        %v1511 = vadd.f32 %v1427, %v1507
        %v1512 = vadd.f32 %v1428, %v1508
        %v1513 = vadd.f32 %v1429, %v1509
        %1514 = vrot.lane.b32.xlu0 %v1090, 121
        %v1515 = vpop.permute.xlu0 %1514
        %1516 = vrot.lane.b32.xlu0 %v1091, 121
        %v1517 = vpop.permute.xlu0 %1516
        %1518 = vrot.lane.b32.xlu0 %v1092, 121
        %v1519 = vpop.permute.xlu0 %1518
        %1520 = vrot.lane.b32.xlu0 %v1093, 121
        %v1521 = vpop.permute.xlu0 %1520
        %s1522 = scalar_lea.vmem %s5, 672
        %v1523 = vld [vmem:[%s1522] sm:$0xff]
        %v1524 = vld [vmem:[%s1522 + $0x8] sm:$0xff]
        %v1525 = vld [vmem:[%s1522 + $0x10] sm:$0xff]
        %v1526 = vld [vmem:[%s1522 + $0x18] sm:$0xff]
        %v1527 = vmul.f32 %v1523, %v1515
        %v1528 = vmul.f32 %v1524, %v1517
        %v1529 = vmul.f32 %v1525, %v1519
        %v1530 = vmul.f32 %v1526, %v1521
        %v1531 = vadd.f32 %v1447, %v1527
        %v1532 = vadd.f32 %v1448, %v1528
        %v1533 = vadd.f32 %v1449, %v1529
        %v1534 = vadd.f32 %v1450, %v1530
        %1535 = vrot.lane.b32.xlu0 %v1090, 120
        %v1536 = vpop.permute.xlu0 %1535
        %1537 = vrot.lane.b32.xlu0 %v1091, 120
        %v1538 = vpop.permute.xlu0 %1537
        %1539 = vrot.lane.b32.xlu0 %v1092, 120
        %v1540 = vpop.permute.xlu0 %1539
        %1541 = vrot.lane.b32.xlu0 %v1093, 120
        %v1542 = vpop.permute.xlu0 %1541
        %s1543 = scalar_lea.vmem %s5, 704
        %v1544 = vld [vmem:[%s1543] sm:$0xff]
        %v1545 = vld [vmem:[%s1543 + $0x8] sm:$0xff]
        %v1546 = vld [vmem:[%s1543 + $0x10] sm:$0xff]
        %v1547 = vld [vmem:[%s1543 + $0x18] sm:$0xff]
        %v1548 = vmul.f32 %v1544, %v1536
        %v1549 = vmul.f32 %v1545, %v1538
        %v1550 = vmul.f32 %v1546, %v1540
        %v1551 = vmul.f32 %v1547, %v1542
        %v1552 = vadd.f32 %v1468, %v1548
        %v1553 = vadd.f32 %v1469, %v1549
        %v1554 = vadd.f32 %v1470, %v1550
        %v1555 = vadd.f32 %v1471, %v1551
        %1556 = vrot.lane.b32.xlu0 %v1090, 119
        %v1557 = vpop.permute.xlu0 %1556
        %1558 = vrot.lane.b32.xlu0 %v1091, 119
        %v1559 = vpop.permute.xlu0 %1558
        %1560 = vrot.lane.b32.xlu0 %v1092, 119
        %v1561 = vpop.permute.xlu0 %1560
        %1562 = vrot.lane.b32.xlu0 %v1093, 119
        %v1563 = vpop.permute.xlu0 %1562
        %s1564 = scalar_lea.vmem %s5, 736
        %v1565 = vld [vmem:[%s1564] sm:$0xff]
        %v1566 = vld [vmem:[%s1564 + $0x8] sm:$0xff]
        %v1567 = vld [vmem:[%s1564 + $0x10] sm:$0xff]
        %v1568 = vld [vmem:[%s1564 + $0x18] sm:$0xff]
        %v1569 = vmul.f32 %v1565, %v1557
        %v1570 = vmul.f32 %v1566, %v1559
        %v1571 = vmul.f32 %v1567, %v1561
        %v1572 = vmul.f32 %v1568, %v1563
        %v1573 = vadd.f32 %v1489, %v1569
        %v1574 = vadd.f32 %v1490, %v1570
        %v1575 = vadd.f32 %v1491, %v1571
        %v1576 = vadd.f32 %v1492, %v1572
        %1577 = vrot.lane.b32.xlu0 %v1090, 118
        %v1578 = vpop.permute.xlu0 %1577
        %1579 = vrot.lane.b32.xlu0 %v1091, 118
        %v1580 = vpop.permute.xlu0 %1579
        %1581 = vrot.lane.b32.xlu0 %v1092, 118
        %v1582 = vpop.permute.xlu0 %1581
        %1583 = vrot.lane.b32.xlu0 %v1093, 118
        %v1584 = vpop.permute.xlu0 %1583
        %s1585 = scalar_lea.vmem %s5, 768
        %v1586 = vld [vmem:[%s1585] sm:$0xff]
        %v1587 = vld [vmem:[%s1585 + $0x8] sm:$0xff]
        %v1588 = vld [vmem:[%s1585 + $0x10] sm:$0xff]
        %v1589 = vld [vmem:[%s1585 + $0x18] sm:$0xff]
        %v1590 = vmul.f32 %v1586, %v1578
        %v1591 = vmul.f32 %v1587, %v1580
        %v1592 = vmul.f32 %v1588, %v1582
        %v1593 = vmul.f32 %v1589, %v1584
        %v1594 = vadd.f32 %v1510, %v1590
        %v1595 = vadd.f32 %v1511, %v1591
        %v1596 = vadd.f32 %v1512, %v1592
        %v1597 = vadd.f32 %v1513, %v1593
        %1598 = vrot.lane.b32.xlu0 %v1090, 117
        %v1599 = vpop.permute.xlu0 %1598
        %1600 = vrot.lane.b32.xlu0 %v1091, 117
        %v1601 = vpop.permute.xlu0 %1600
        %1602 = vrot.lane.b32.xlu0 %v1092, 117
        %v1603 = vpop.permute.xlu0 %1602
        %1604 = vrot.lane.b32.xlu0 %v1093, 117
        %v1605 = vpop.permute.xlu0 %1604
        %s1606 = scalar_lea.vmem %s5, 800
        %v1607 = vld [vmem:[%s1606] sm:$0xff]
        %v1608 = vld [vmem:[%s1606 + $0x8] sm:$0xff]
        %v1609 = vld [vmem:[%s1606 + $0x10] sm:$0xff]
        %v1610 = vld [vmem:[%s1606 + $0x18] sm:$0xff]
        %v1611 = vmul.f32 %v1607, %v1599
        %v1612 = vmul.f32 %v1608, %v1601
        %v1613 = vmul.f32 %v1609, %v1603
        %v1614 = vmul.f32 %v1610, %v1605
        %v1615 = vadd.f32 %v1531, %v1611
        %v1616 = vadd.f32 %v1532, %v1612
        %v1617 = vadd.f32 %v1533, %v1613
        %v1618 = vadd.f32 %v1534, %v1614
        %1619 = vrot.lane.b32.xlu0 %v1090, 116
        %v1620 = vpop.permute.xlu0 %1619
        %1621 = vrot.lane.b32.xlu0 %v1091, 116
        %v1622 = vpop.permute.xlu0 %1621
        %1623 = vrot.lane.b32.xlu0 %v1092, 116
        %v1624 = vpop.permute.xlu0 %1623
        %1625 = vrot.lane.b32.xlu0 %v1093, 116
        %v1626 = vpop.permute.xlu0 %1625
        %s1627 = scalar_lea.vmem %s5, 832
        %v1628 = vld [vmem:[%s1627] sm:$0xff]
        %v1629 = vld [vmem:[%s1627 + $0x8] sm:$0xff]
        %v1630 = vld [vmem:[%s1627 + $0x10] sm:$0xff]
        %v1631 = vld [vmem:[%s1627 + $0x18] sm:$0xff]
        %v1632 = vmul.f32 %v1628, %v1620
        %v1633 = vmul.f32 %v1629, %v1622
        %v1634 = vmul.f32 %v1630, %v1624
        %v1635 = vmul.f32 %v1631, %v1626
        %v1636 = vadd.f32 %v1552, %v1632
        %v1637 = vadd.f32 %v1553, %v1633
        %v1638 = vadd.f32 %v1554, %v1634
        %v1639 = vadd.f32 %v1555, %v1635
        %1640 = vrot.lane.b32.xlu0 %v1090, 115
        %v1641 = vpop.permute.xlu0 %1640
        %1642 = vrot.lane.b32.xlu0 %v1091, 115
        %v1643 = vpop.permute.xlu0 %1642
        %1644 = vrot.lane.b32.xlu0 %v1092, 115
        %v1645 = vpop.permute.xlu0 %1644
        %1646 = vrot.lane.b32.xlu0 %v1093, 115
        %v1647 = vpop.permute.xlu0 %1646
        %s1648 = scalar_lea.vmem %s5, 864
        %v1649 = vld [vmem:[%s1648] sm:$0xff]
        %v1650 = vld [vmem:[%s1648 + $0x8] sm:$0xff]
        %v1651 = vld [vmem:[%s1648 + $0x10] sm:$0xff]
        %v1652 = vld [vmem:[%s1648 + $0x18] sm:$0xff]
        %v1653 = vmul.f32 %v1649, %v1641
        %v1654 = vmul.f32 %v1650, %v1643
        %v1655 = vmul.f32 %v1651, %v1645
        %v1656 = vmul.f32 %v1652, %v1647
        %v1657 = vadd.f32 %v1573, %v1653
        %v1658 = vadd.f32 %v1574, %v1654
        %v1659 = vadd.f32 %v1575, %v1655
        %v1660 = vadd.f32 %v1576, %v1656
        %1661 = vrot.lane.b32.xlu0 %v1090, 114
        %v1662 = vpop.permute.xlu0 %1661
        %1663 = vrot.lane.b32.xlu0 %v1091, 114
        %v1664 = vpop.permute.xlu0 %1663
        %1665 = vrot.lane.b32.xlu0 %v1092, 114
        %v1666 = vpop.permute.xlu0 %1665
        %1667 = vrot.lane.b32.xlu0 %v1093, 114
        %v1668 = vpop.permute.xlu0 %1667
        %s1669 = scalar_lea.vmem %s5, 896
        %v1670 = vld [vmem:[%s1669] sm:$0xff]
        %v1671 = vld [vmem:[%s1669 + $0x8] sm:$0xff]
        %v1672 = vld [vmem:[%s1669 + $0x10] sm:$0xff]
        %v1673 = vld [vmem:[%s1669 + $0x18] sm:$0xff]
        %v1674 = vmul.f32 %v1670, %v1662
        %v1675 = vmul.f32 %v1671, %v1664
        %v1676 = vmul.f32 %v1672, %v1666
        %v1677 = vmul.f32 %v1673, %v1668
        %v1678 = vadd.f32 %v1594, %v1674
        %v1679 = vadd.f32 %v1595, %v1675
        %v1680 = vadd.f32 %v1596, %v1676
        %v1681 = vadd.f32 %v1597, %v1677
        %v1682 = vadd.f32 %v1678, %v1615
        %v1683 = vadd.f32 %v1679, %v1616
        %v1684 = vadd.f32 %v1680, %v1617
        %v1685 = vadd.f32 %v1681, %v1618
        %v1686 = vadd.f32 %v1636, %v1657
        %v1687 = vadd.f32 %v1637, %v1658
        %v1688 = vadd.f32 %v1638, %v1659
        %v1689 = vadd.f32 %v1639, %v1660
        %v1690 = vadd.f32 %v1682, %v1686
        %v1691 = vadd.f32 %v1683, %v1687
        %v1692 = vadd.f32 %v1684, %v1688
        %v1693 = vadd.f32 %v1685, %v1689
        %v1694 = vadd.f32 %v1690, %v1094
        %v1695 = vadd.f32 %v1691, %v1095
        %v1696 = vadd.f32 %v1692, %v1096
        %v1697 = vadd.f32 %v1693, %v1097
        %v1698 = vsel %vm297, %v1694, 0.0
        %v1699 = vsel %vm297, %v1695, 0.0
        %v1700 = vsel %vm297, %v1696, 0.0
        %v1701 = vsel %vm297, %v1697, 0.0
        %1702 = vst.msk [vmem:[%s271] sm:$0xff] %vm286, %v1698
        %1703 = vst.msk [vmem:[%s271 + $0x8] sm:$0xff] %vm286, %v1699
        %1704 = vst.msk [vmem:[%s271 + $0x10] sm:$0xff] %vm286, %v1700
        %1705 = vst.msk [vmem:[%s271 + $0x18] sm:$0xff] %vm286, %v1701
        %s1706 = sand.u32 %s181, 1
        %s1707 = scalar_lea.sflag [#allocation4], %s1706
        %s1708 = sand.u32 %s181, 1
        %s1709 = smul.addr %s1708, 32
        %s1710 = scalar_lea.vmem [#allocation3], %s1709
        // Predicated region
        $region49: #{_lambda_.1} parent=47 // pred_check
          %p1711 = pneg %p191
        $region50: #{_lambda_.1} parent=47 // pred_check_branch
          %1713 = sbr.rel (%p1711) target = $region52
        $region51: #{_lambda_.1} parent=47 // pred_region
          %s1715 = ssub.s32 512, 512
          %1716 = vsyncadd %s1707, %s1715
          %s1717 = smul.addr %s21, 4
          %s1718 = smul.addr %s1717, 128
          %s1719 = scalar_lea.hbm %s7, %s1718
          %s1720 = sshll.u32 %s1710, 4
          %s1721 = int_to_ptr.vmem [resolvable:$true] %s1720
          %1726 = dma.vmem_to_hbm [thread:$0]  %s1721, 512, %s1719, %s1707, 128, 128, 8
        $region52: #{_lambda_.1} parent=47 // pred_fallthru
          _
      $region48: #{_lambda_.1} parent=5 // pred_fallthru
        _
      %p1727 = scmp.le.s32.totalorder 2, %s16
      // Predicated region
      $region53: #{_lambda_.1} parent=5 // pred_check
        %p1728 = pneg %p1727
      $region54: #{_lambda_.1} parent=5 // pred_check_branch
        %1730 = sbr.rel (%p1728) target = $region56
      $region55: #{_lambda_.1} parent=5 // pred_region
        %s1731 = ssub.s32 %s16, 2
        // Predicated region
        $region57: #{_lambda_.1} parent=55 // pred_check
          %p1732 = pneg %p197
        $region58: #{_lambda_.1} parent=55 // pred_check_branch
          %1734 = sbr.rel (%p1732) target = $region60
        $region59: #{_lambda_.1} parent=55 // pred_region
          %s1735 = sand.u32 %s182, 1
          %s1736 = scalar_lea.sflag [#allocation4], %s1735
          %s1737 = sand.u32 %s182, 1
          %s1738 = smul.addr %s1737, 32
          %s1739 = scalar_lea.vmem [#allocation3], %s1738
          %1740 = dma.done %s1736, 512
        $region60: #{_lambda_.1} parent=55 // pred_fallthru
          _
      $region56: #{_lambda_.1} parent=5 // pred_fallthru
        _
    $region6: #{_lambda_.1} parent=1 // loop_footer
      %s20 = sadd.s32 1, %s16
    $region7: #{_lambda_.1} parent=1 // loop_footer_branch
      %15 = sbr.rel target = $region3
    $region8: #{_lambda_.1} parent=1 // loop_exit
      _
    %1741 = vsyncpa [#allocation4], 1
    %s1742 = scalar_lea.sflag [#allocation4], 1
    %1743 = vsyncpa %s1742, 1

</llo_original>
